<compile_context>
chip_gen: v5e
topology: v5e:2x2
jax: 0.10.0
libtpu: 0.0.40
codegen_flags: <defaults>
</compile_context>

<pallas_src>
import jax
import jax.numpy as jnp
from jax import lax
from jax.experimental import pallas as pl
from jax.experimental.pallas import tpu as pltpu

EPS = 1e-5          # BatchNorm2d default eps
C_OUT = 20          # conv output channels
KSIZE = 5
NUM_CLASSES = 10
HIDDEN = 64


# ------------------------------------------------------------------ kernel --

def cnn_fused_kernel(patches_ref, wconv_ref, bconv_ref, gamma_ref, beta_ref,
                     wfct_ref, bfc_ref, out_ref, flat_ref):
    """Fused conv (im2col matmul) + bias + ReLU + BatchNorm (batch stats,
    biased variance, training-mode forward) + 2x2/stride-2 max pool + fc1∘fc2.

    patches_ref: (4, K, B*P) bf16   4 pooling quadrants, K = Cin*5*5, P = 13*13
    wconv_ref:   (20, K)     bf16   conv weight, im2col layout
    bconv/gamma/beta_ref: (20, 1) f32
    wfct_ref:    (10, 3380)  f32    collapsed fc1∘fc2 weight, transposed (lane-dense)
    bfc_ref:     (1, 10)     f32
    out_ref:     (B, 10)     f32    logits
    flat_ref:    (B, 3380)   f32    VMEM scratch: pooled acts in Torch flatten order
    """
    nq = patches_ref.shape[0]                    # 4 pooling quadrants
    nb = flat_ref.shape[0]                       # batch
    P = flat_ref.shape[1] // C_OUT               # pooled positions per image (169)
    total = jnp.float32(nq * nb * P)             # elements per channel, pre-pool

    w = wconv_ref[...]
    bias = bconv_ref[...]

    # 4 conv dots, batch folded into the N/lane axis (lane index = b*P + p).
    # BN stats as vector accumulators; running max/min across quadrants.
    s_vec = ss_vec = mx = mn = None
    for q in range(nq):                          # static unroll: 4 quadrants
        c = jnp.dot(w, patches_ref[q],
                    preferred_element_type=jnp.float32) + bias    # (20, B*P) f32
        c = jnp.maximum(c, 0.0)                                   # ReLU
        if q == 0:
            s_vec, ss_vec, mx, mn = c, c * c, c, c
        else:
            s_vec = s_vec + c
            ss_vec = ss_vec + c * c
            mx = jnp.maximum(mx, c)
            mn = jnp.minimum(mn, c)

    # Only two cross-lane (XLU) reductions for the whole kernel.
    mean = jnp.sum(s_vec, axis=1, keepdims=True) / total
    ex2 = jnp.sum(ss_vec, axis=1, keepdims=True) / total
    var = jnp.maximum(ex2 - mean * mean, 0.0)        # biased variance
    inv = lax.rsqrt(var + EPS)
    scale = gamma_ref[...] * inv
    shift = beta_ref[...] - mean * scale

    # max over quadrants of (scale*x + shift):
    #   == max(scale*max_q(x), scale*min_q(x)) + shift   (exact for any sign).
    pooled = jnp.maximum(mx * scale, mn * scale) + shift           # (20, B*P)

    # Re-pack into Torch's reshape order flat[b, c*169+p] in a VMEM scratch
    # (stays on-chip; no HBM materialization of the 3380-wide activations).
    for b in range(nb):
        for ch in range(C_OUT):
            flat_ref[b:b + 1, ch * P:(ch + 1) * P] = \
                pooled[ch:ch + 1, b * P:(b + 1) * P]

    # Collapsed fc1∘fc2 as one matmul against the transposed (lane-dense)
    # weight: contract the last dim of both operands (A @ W^T).
    logits = lax.dot_general(flat_ref[...], wfct_ref[...],
                             dimension_numbers=(((1,), (1,)), ((), ())),
                             preferred_element_type=jnp.float32)   # (B, 10)
    out_ref[...] = logits + bfc_ref[...]


# ----------------------------------------------------------- weight prep ----

def prepare_params(params):
    """One-time host-side weight prep: im2col bf16 conv weight + collapsed,
    transposed FC weight."""
    conv_w, conv_b, gamma, beta, w1, b1, w2, b2 = params
    w_conv = conv_w.reshape(C_OUT, -1).astype(jnp.bfloat16)   # (20, Cin*25)
    w_fc_t = jnp.asarray((w1 @ w2).T)                         # (10, 3380) lane-dense
    b_fc = b1 @ w2 + b2                                       # (10,)
    return (w_conv,
            conv_b.reshape(C_OUT, 1),
            gamma.reshape(C_OUT, 1),
            beta.reshape(C_OUT, 1),
            w_fc_t,
            b_fc.reshape(1, NUM_CLASSES))


# ------------------------------------------------------------------ wrapper --

def cnn_forward(x, prepared):
    w_conv, b_conv, gamma, beta, w_fc_t, b_fc = prepared
    B, Cin, H, W = x.shape
    OH, OW = H + 2 - KSIZE + 1, W + 2 - KSIZE + 1      # padding=1 -> 26 x 26
    PH, PW = OH // 2, OW // 2                           # maxpool 2x2 -> 13 x 13
    P = PH * PW
    K = Cin * KSIZE * KSIZE
    F1 = C_OUT * P                                      # 3380
    N = B * P

    # ---- im2col glue: the pooling-quadrant split is folded into the tap
    # slice starts (stride-2 windows), so the old 6-D transpose and its extra
    # HBM copy are gone; patches are built directly in bf16.
    # TODO(synk): building the im2col patches fully in-kernel would need
    # stride-2 lane gathers (deinterleave) with no cheap Mosaic primitive, so
    # this shrunken XLA glue remains on the host.
    xp = jnp.pad(x.astype(jnp.bfloat16), ((0, 0), (0, 0), (1, 1), (1, 1)))
    quads = []
    for dh in range(2):
        for dw in range(2):
            taps = []
            for ci in range(Cin):
                for kh in range(KSIZE):
                    for kw in range(KSIZE):
                        taps.append(xp[:, ci,
                                       dh + kh:dh + kh + 2 * PH:2,
                                       dw + kw:dw + kw + 2 * PW:2])  # (B,13,13)
            quads.append(jnp.stack(taps, axis=0).reshape(K, N))       # (K, B*P)
    patches = jnp.stack(quads, axis=0)                                # (4, K, B*P) bf16

    # ---- single fused kernel: conv + bias + relu + BN + maxpool + fc1∘fc2 ----
    logits = pl.pallas_call(
        cnn_fused_kernel,
        out_shape=jax.ShapeDtypeStruct((B, NUM_CLASSES), jnp.float32),
        grid=(1,),
        in_specs=[
            pl.BlockSpec((4, K, N), lambda i: (0, 0, 0)),
            pl.BlockSpec((C_OUT, K), lambda i: (0, 0)),
            pl.BlockSpec((C_OUT, 1), lambda i: (0, 0)),
            pl.BlockSpec((C_OUT, 1), lambda i: (0, 0)),
            pl.BlockSpec((C_OUT, 1), lambda i: (0, 0)),
            pl.BlockSpec((NUM_CLASSES, F1), lambda i: (0, 0)),
            pl.BlockSpec((1, NUM_CLASSES), lambda i: (0, 0)),
        ],
        out_specs=pl.BlockSpec((B, NUM_CLASSES), lambda i: (0, 0)),
        scratch_shapes=[pltpu.VMEM((B, F1), jnp.float32)],
        compiler_params=pltpu.CompilerParams(
            dimension_semantics=("arbitrary",)),
    )(patches, w_conv, b_conv, gamma, beta, w_fc_t, b_fc)
    return logits


# --------------------------------------------------------------- reference --

def cnn_reference(x, params):
    conv_w, conv_b, gamma, beta, w1, b1, w2, b2 = params
    y = lax.conv_general_dilated(x, conv_w, (1, 1), ((1, 1), (1, 1)),
                                 dimension_numbers=("NCHW", "OIHW", "NCHW"))
    y = jnp.maximum(y + conv_b[None, :, None, None], 0.0)
    mean = y.mean(axis=(0, 2, 3), keepdims=True)
    var = ((y - mean) ** 2).mean(axis=(0, 2, 3), keepdims=True)
    y = gamma[None, :, None, None] * (y - mean) / jnp.sqrt(var + EPS) \
        + beta[None, :, None, None]
    B, C, H, W = y.shape
    y = y.reshape(B, C, H // 2, 2, W // 2, 2).max(axis=(3, 5))
    y = y.reshape(B, -1)
    h = y @ w1 + b1
    return h @ w2 + b2


# --------------------------------------------------------------------- main --

if __name__ == "__main__":
    # in_channels=1, num_classes=10; spatial must be 28x28 so that
    # 20 * 13 * 13 == 3380 matches fc1's input dimension.
    B, Cin, H, W = 2, 1, 28, 28
    key = jax.random.PRNGKey(0)
    ks = jax.random.split(key, 9)
    x = jax.random.normal(ks[0], (B, Cin, H, W), jnp.float32)

    conv_w = jax.random.normal(ks[1], (C_OUT, Cin, KSIZE, KSIZE), jnp.float32) * 0.1
    conv_b = jax.random.normal(ks[2], (C_OUT,), jnp.float32) * 0.1
    gamma = 1.0 + 0.1 * jax.random.normal(ks[3], (C_OUT,), jnp.float32)
    beta = 0.1 * jax.random.normal(ks[4], (C_OUT,), jnp.float32)
    w1 = jax.random.normal(ks[5], (3380, HIDDEN), jnp.float32) * 0.02
    b1 = jax.random.normal(ks[6], (HIDDEN,), jnp.float32) * 0.1
    w2 = jax.random.normal(ks[7], (HIDDEN, NUM_CLASSES), jnp.float32) * 0.1
    b2 = jax.random.normal(ks[8], (NUM_CLASSES,), jnp.float32) * 0.1
    params = (conv_w, conv_b, gamma, beta, w1, b1, w2, b2)

    prepared = prepare_params(params)          # one-time host-side weight prep
    fwd = jax.jit(cnn_forward)
    out = jax.block_until_ready(fwd(x, prepared))
    ref = cnn_reference(x, params)

    assert out.shape == (B, NUM_CLASSES), out.shape
    # Conv MXU operands are bf16 (FC contraction stays f32) -> slightly relaxed
    # tolerance vs the all-f32 reference.
    if not bool(jnp.allclose(out, ref, atol=1e-2, rtol=1e-2)):
        raise AssertionError("Pallas CNN output does not match JAX reference")
    print("KERNEL_OK")
</pallas_src>

<mosaic_0001>
module attributes {stable_mosaic.version = 11 : i64} {
  func.func @cnn_fused_kernel(%arg0: i32, %arg1: memref<4x25x338xbf16, #tpu.memory_space<vmem>>, %arg2: memref<20x25xbf16, #tpu.memory_space<vmem>>, %arg3: memref<20x1xf32, #tpu.memory_space<vmem>>, %arg4: memref<20x1xf32, #tpu.memory_space<vmem>>, %arg5: memref<20x1xf32, #tpu.memory_space<vmem>>, %arg6: memref<10x3380xf32, #tpu.memory_space<vmem>>, %arg7: memref<1x10xf32, #tpu.memory_space<vmem>>, %arg8: memref<2x10xf32, #tpu.memory_space<vmem>>, %arg9: memref<2x3380xf32, #tpu.memory_space<vmem>>) attributes {dimension_semantics = [#tpu.dimension_semantics<arbitrary>], iteration_bounds = array<i64: 1>, scalar_prefetch = 0 : i64, scratch_operands = 1 : i64, tpu.core_type = #tpu.core_type<tc>, window_params = [{pipeline_mode = #tpu.pipeline_mode<synchronous>, transform_indices = @transform_0, window_bounds = array<i64: 4, 25, 338>}, {pipeline_mode = #tpu.pipeline_mode<synchronous>, transform_indices = @transform_1, window_bounds = array<i64: 20, 25>}, {pipeline_mode = #tpu.pipeline_mode<synchronous>, transform_indices = @transform_2, window_bounds = array<i64: 20, 1>}, {pipeline_mode = #tpu.pipeline_mode<synchronous>, transform_indices = @transform_3, window_bounds = array<i64: 20, 1>}, {pipeline_mode = #tpu.pipeline_mode<synchronous>, transform_indices = @transform_4, window_bounds = array<i64: 20, 1>}, {pipeline_mode = #tpu.pipeline_mode<synchronous>, transform_indices = @transform_5, window_bounds = array<i64: 10, 3380>}, {pipeline_mode = #tpu.pipeline_mode<synchronous>, transform_indices = @transform_6, window_bounds = array<i64: 1, 10>}, {pipeline_mode = #tpu.pipeline_mode<synchronous>, transform_indices = @transform_7, window_bounds = array<i64: 2, 10>}]} {
    %c0 = arith.constant 0 : index
    %c0_0 = arith.constant 0 : index
    %0 = vector.load %arg2[%c0, %c0_0] : memref<20x25xbf16, #tpu.memory_space<vmem>>, vector<20x25xbf16>
    %c0_1 = arith.constant 0 : index
    %c0_2 = arith.constant 0 : index
    %1 = vector.load %arg3[%c0_1, %c0_2] : memref<20x1xf32, #tpu.memory_space<vmem>>, vector<20x1xf32>
    %c0_3 = arith.constant 0 : index
    %c0_4 = arith.constant 0 : index
    %c0_5 = arith.constant 0 : index
    %2 = vector.load %arg1[%c0_3, %c0_4, %c0_5] : memref<4x25x338xbf16, #tpu.memory_space<vmem>>, vector<1x25x338xbf16>
    %3 = vector.shape_cast %2 : vector<1x25x338xbf16> to vector<25x338xbf16>
    %cst = arith.constant dense<0.000000e+00> : vector<20x338xf32>
    %4 = tpu.matmul %0, %3, %cst {dimension_numbers = #tpu.dot_dimension_numbers<[1], [0], [0], [1], [0, 0, 1, 1], [], []>} : vector<20x25xbf16>, vector<25x338xbf16>, vector<20x338xf32> -> vector<20x338xf32>
    %5 = vector.broadcast %1 : vector<20x1xf32> to vector<20x338xf32>
    %6 = arith.addf %4, %5 : vector<20x338xf32>
    %cst_6 = arith.constant 0.000000e+00 : f32
    %7 = vector.broadcast %cst_6 : f32 to vector<20x338xf32>
    %8 = arith.maximumf %6, %7 : vector<20x338xf32>
    %9 = arith.mulf %8, %8 : vector<20x338xf32>
    %c1 = arith.constant 1 : index
    %c0_7 = arith.constant 0 : index
    %c0_8 = arith.constant 0 : index
    %10 = vector.load %arg1[%c1, %c0_7, %c0_8] : memref<4x25x338xbf16, #tpu.memory_space<vmem>>, vector<1x25x338xbf16>
    %11 = vector.shape_cast %10 : vector<1x25x338xbf16> to vector<25x338xbf16>
    %cst_9 = arith.constant dense<0.000000e+00> : vector<20x338xf32>
    %12 = tpu.matmul %0, %11, %cst_9 {dimension_numbers = #tpu.dot_dimension_numbers<[1], [0], [0], [1], [0, 0, 1, 1], [], []>} : vector<20x25xbf16>, vector<25x338xbf16>, vector<20x338xf32> -> vector<20x338xf32>
    %13 = vector.broadcast %1 : vector<20x1xf32> to vector<20x338xf32>
    %14 = arith.addf %12, %13 : vector<20x338xf32>
    %cst_10 = arith.constant 0.000000e+00 : f32
    %15 = vector.broadcast %cst_10 : f32 to vector<20x338xf32>
    %16 = arith.maximumf %14, %15 : vector<20x338xf32>
    %17 = arith.addf %8, %16 : vector<20x338xf32>
    %18 = arith.mulf %16, %16 : vector<20x338xf32>
    %19 = arith.addf %9, %18 : vector<20x338xf32>
    %20 = arith.maximumf %8, %16 : vector<20x338xf32>
    %21 = arith.minimumf %8, %16 : vector<20x338xf32>
    %c2 = arith.constant 2 : index
    %c0_11 = arith.constant 0 : index
    %c0_12 = arith.constant 0 : index
    %22 = vector.load %arg1[%c2, %c0_11, %c0_12] : memref<4x25x338xbf16, #tpu.memory_space<vmem>>, vector<1x25x338xbf16>
    %23 = vector.shape_cast %22 : vector<1x25x338xbf16> to vector<25x338xbf16>
    %cst_13 = arith.constant dense<0.000000e+00> : vector<20x338xf32>
    %24 = tpu.matmul %0, %23, %cst_13 {dimension_numbers = #tpu.dot_dimension_numbers<[1], [0], [0], [1], [0, 0, 1, 1], [], []>} : vector<20x25xbf16>, vector<25x338xbf16>, vector<20x338xf32> -> vector<20x338xf32>
    %25 = vector.broadcast %1 : vector<20x1xf32> to vector<20x338xf32>
    %26 = arith.addf %24, %25 : vector<20x338xf32>
    %cst_14 = arith.constant 0.000000e+00 : f32
    %27 = vector.broadcast %cst_14 : f32 to vector<20x338xf32>
    %28 = arith.maximumf %26, %27 : vector<20x338xf32>
    %29 = arith.addf %17, %28 : vector<20x338xf32>
    %30 = arith.mulf %28, %28 : vector<20x338xf32>
    %31 = arith.addf %19, %30 : vector<20x338xf32>
    %32 = arith.maximumf %20, %28 : vector<20x338xf32>
    %33 = arith.minimumf %21, %28 : vector<20x338xf32>
    %c3 = arith.constant 3 : index
    %c0_15 = arith.constant 0 : index
    %c0_16 = arith.constant 0 : index
    %34 = vector.load %arg1[%c3, %c0_15, %c0_16] : memref<4x25x338xbf16, #tpu.memory_space<vmem>>, vector<1x25x338xbf16>
    %35 = vector.shape_cast %34 : vector<1x25x338xbf16> to vector<25x338xbf16>
    %cst_17 = arith.constant dense<0.000000e+00> : vector<20x338xf32>
    %36 = tpu.matmul %0, %35, %cst_17 {dimension_numbers = #tpu.dot_dimension_numbers<[1], [0], [0], [1], [0, 0, 1, 1], [], []>} : vector<20x25xbf16>, vector<25x338xbf16>, vector<20x338xf32> -> vector<20x338xf32>
    %37 = vector.broadcast %1 : vector<20x1xf32> to vector<20x338xf32>
    %38 = arith.addf %36, %37 : vector<20x338xf32>
    %cst_18 = arith.constant 0.000000e+00 : f32
    %39 = vector.broadcast %cst_18 : f32 to vector<20x338xf32>
    %40 = arith.maximumf %38, %39 : vector<20x338xf32>
    %41 = arith.addf %29, %40 : vector<20x338xf32>
    %42 = arith.mulf %40, %40 : vector<20x338xf32>
    %43 = arith.addf %31, %42 : vector<20x338xf32>
    %44 = arith.maximumf %32, %40 : vector<20x338xf32>
    %45 = arith.minimumf %33, %40 : vector<20x338xf32>
    %cst_19 = arith.constant dense<0.000000e+00> : vector<20xf32>
    %46 = vector.multi_reduction <add>, %41, %cst_19 [1] : vector<20x338xf32> to vector<20xf32>
    %47 = vector.shape_cast %46 : vector<20xf32> to vector<20x1xf32>
    %cst_20 = arith.constant 1.352000e+03 : f32
    %48 = vector.broadcast %cst_20 : f32 to vector<20x1xf32>
    %49 = arith.divf %47, %48 : vector<20x1xf32>
    %cst_21 = arith.constant dense<0.000000e+00> : vector<20xf32>
    %50 = vector.multi_reduction <add>, %43, %cst_21 [1] : vector<20x338xf32> to vector<20xf32>
    %51 = vector.shape_cast %50 : vector<20xf32> to vector<20x1xf32>
    %cst_22 = arith.constant 1.352000e+03 : f32
    %52 = vector.broadcast %cst_22 : f32 to vector<20x1xf32>
    %53 = arith.divf %51, %52 : vector<20x1xf32>
    %54 = arith.mulf %49, %49 : vector<20x1xf32>
    %55 = arith.subf %53, %54 : vector<20x1xf32>
    %cst_23 = arith.constant 0.000000e+00 : f32
    %56 = vector.broadcast %cst_23 : f32 to vector<20x1xf32>
    %57 = arith.maximumf %55, %56 : vector<20x1xf32>
    %cst_24 = arith.constant 9.99999974E-6 : f32
    %58 = vector.broadcast %cst_24 : f32 to vector<20x1xf32>
    %59 = arith.addf %57, %58 : vector<20x1xf32>
    %60 = math.rsqrt %59 : vector<20x1xf32>
    %c0_25 = arith.constant 0 : index
    %c0_26 = arith.constant 0 : index
    %61 = vector.load %arg4[%c0_25, %c0_26] : memref<20x1xf32, #tpu.memory_space<vmem>>, vector<20x1xf32>
    %62 = arith.mulf %61, %60 : vector<20x1xf32>
    %c0_27 = arith.constant 0 : index
    %c0_28 = arith.constant 0 : index
    %63 = vector.load %arg5[%c0_27, %c0_28] : memref<20x1xf32, #tpu.memory_space<vmem>>, vector<20x1xf32>
    %64 = arith.mulf %49, %62 : vector<20x1xf32>
    %65 = arith.subf %63, %64 : vector<20x1xf32>
    %66 = vector.broadcast %62 : vector<20x1xf32> to vector<20x338xf32>
    %67 = arith.mulf %44, %66 : vector<20x338xf32>
    %68 = vector.broadcast %62 : vector<20x1xf32> to vector<20x338xf32>
    %69 = arith.mulf %45, %68 : vector<20x338xf32>
    %70 = arith.maximumf %67, %69 : vector<20x338xf32>
    %71 = vector.broadcast %65 : vector<20x1xf32> to vector<20x338xf32>
    %72 = arith.addf %70, %71 : vector<20x338xf32>
    %73 = vector.extract_strided_slice %72 {offsets = [0, 0], sizes = [1, 169], strides = [1, 1]} : vector<20x338xf32> to vector<1x169xf32>
    %c0_29 = arith.constant 0 : index
    %c0_30 = arith.constant 0 : index
    %74 = vector.load %arg9[%c0_29, %c0_30] : memref<2x3380xf32, #tpu.memory_space<vmem>>, vector<1x169xf32>
    tpu.vector_store %arg9[%c0_29, %c0_30], %73 {strides = array<i32>} : memref<2x3380xf32, #tpu.memory_space<vmem>>, vector<1x169xf32>,
    %75 = vector.extract_strided_slice %72 {offsets = [1, 0], sizes = [1, 169], strides = [1, 1]} : vector<20x338xf32> to vector<1x169xf32>
    %c0_31 = arith.constant 0 : index
    %c169 = arith.constant 169 : index
    %76 = vector.load %arg9[%c0_31, %c169] : memref<2x3380xf32, #tpu.memory_space<vmem>>, vector<1x169xf32>
    tpu.vector_store %arg9[%c0_31, %c169], %75 {strides = array<i32>} : memref<2x3380xf32, #tpu.memory_space<vmem>>, vector<1x169xf32>,
    %77 = vector.extract_strided_slice %72 {offsets = [2, 0], sizes = [1, 169], strides = [1, 1]} : vector<20x338xf32> to vector<1x169xf32>
    %c0_32 = arith.constant 0 : index
    %c338 = arith.constant 338 : index
    %78 = vector.load %arg9[%c0_32, %c338] : memref<2x3380xf32, #tpu.memory_space<vmem>>, vector<1x169xf32>
    tpu.vector_store %arg9[%c0_32, %c338], %77 {strides = array<i32>} : memref<2x3380xf32, #tpu.memory_space<vmem>>, vector<1x169xf32>,
    %79 = vector.extract_strided_slice %72 {offsets = [3, 0], sizes = [1, 169], strides = [1, 1]} : vector<20x338xf32> to vector<1x169xf32>
    %c0_33 = arith.constant 0 : index
    %c507 = arith.constant 507 : index
    %80 = vector.load %arg9[%c0_33, %c507] : memref<2x3380xf32, #tpu.memory_space<vmem>>, vector<1x169xf32>
    tpu.vector_store %arg9[%c0_33, %c507], %79 {strides = array<i32>} : memref<2x3380xf32, #tpu.memory_space<vmem>>, vector<1x169xf32>,
    %81 = vector.extract_strided_slice %72 {offsets = [4, 0], sizes = [1, 169], strides = [1, 1]} : vector<20x338xf32> to vector<1x169xf32>
    %c0_34 = arith.constant 0 : index
    %c676 = arith.constant 676 : index
    %82 = vector.load %arg9[%c0_34, %c676] : memref<2x3380xf32, #tpu.memory_space<vmem>>, vector<1x169xf32>
    tpu.vector_store %arg9[%c0_34, %c676], %81 {strides = array<i32>} : memref<2x3380xf32, #tpu.memory_space<vmem>>, vector<1x169xf32>,
    %83 = vector.extract_strided_slice %72 {offsets = [5, 0], sizes = [1, 169], strides = [1, 1]} : vector<20x338xf32> to vector<1x169xf32>
    %c0_35 = arith.constant 0 : index
    %c845 = arith.constant 845 : index
    %84 = vector.load %arg9[%c0_35, %c845] : memref<2x3380xf32, #tpu.memory_space<vmem>>, vector<1x169xf32>
    tpu.vector_store %arg9[%c0_35, %c845], %83 {strides = array<i32>} : memref<2x3380xf32, #tpu.memory_space<vmem>>, vector<1x169xf32>,
    %85 = vector.extract_strided_slice %72 {offsets = [6, 0], sizes = [1, 169], strides = [1, 1]} : vector<20x338xf32> to vector<1x169xf32>
    %c0_36 = arith.constant 0 : index
    %c1014 = arith.constant 1014 : index
    %86 = vector.load %arg9[%c0_36, %c1014] : memref<2x3380xf32, #tpu.memory_space<vmem>>, vector<1x169xf32>
    tpu.vector_store %arg9[%c0_36, %c1014], %85 {strides = array<i32>} : memref<2x3380xf32, #tpu.memory_space<vmem>>, vector<1x169xf32>,
    %87 = vector.extract_strided_slice %72 {offsets = [7, 0], sizes = [1, 169], strides = [1, 1]} : vector<20x338xf32> to vector<1x169xf32>
    %c0_37 = arith.constant 0 : index
    %c1183 = arith.constant 1183 : index
    %88 = vector.load %arg9[%c0_37, %c1183] : memref<2x3380xf32, #tpu.memory_space<vmem>>, vector<1x169xf32>
    tpu.vector_store %arg9[%c0_37, %c1183], %87 {strides = array<i32>} : memref<2x3380xf32, #tpu.memory_space<vmem>>, vector<1x169xf32>,
    %89 = vector.extract_strided_slice %72 {offsets = [8, 0], sizes = [1, 169], strides = [1, 1]} : vector<20x338xf32> to vector<1x169xf32>
    %c0_38 = arith.constant 0 : index
    %c1352 = arith.constant 1352 : index
    %90 = vector.load %arg9[%c0_38, %c1352] : memref<2x3380xf32, #tpu.memory_space<vmem>>, vector<1x169xf32>
    tpu.vector_store %arg9[%c0_38, %c1352], %89 {strides = array<i32>} : memref<2x3380xf32, #tpu.memory_space<vmem>>, vector<1x169xf32>,
    %91 = vector.extract_strided_slice %72 {offsets = [9, 0], sizes = [1, 169], strides = [1, 1]} : vector<20x338xf32> to vector<1x169xf32>
    %c0_39 = arith.constant 0 : index
    %c1521 = arith.constant 1521 : index
    %92 = vector.load %arg9[%c0_39, %c1521] : memref<2x3380xf32, #tpu.memory_space<vmem>>, vector<1x169xf32>
    tpu.vector_store %arg9[%c0_39, %c1521], %91 {strides = array<i32>} : memref<2x3380xf32, #tpu.memory_space<vmem>>, vector<1x169xf32>,
    %93 = vector.extract_strided_slice %72 {offsets = [10, 0], sizes = [1, 169], strides = [1, 1]} : vector<20x338xf32> to vector<1x169xf32>
    %c0_40 = arith.constant 0 : index
    %c1690 = arith.constant 1690 : index
    %94 = vector.load %arg9[%c0_40, %c1690] : memref<2x3380xf32, #tpu.memory_space<vmem>>, vector<1x169xf32>
    tpu.vector_store %arg9[%c0_40, %c1690], %93 {strides = array<i32>} : memref<2x3380xf32, #tpu.memory_space<vmem>>, vector<1x169xf32>,
    %95 = vector.extract_strided_slice %72 {offsets = [11, 0], sizes = [1, 169], strides = [1, 1]} : vector<20x338xf32> to vector<1x169xf32>
    %c0_41 = arith.constant 0 : index
    %c1859 = arith.constant 1859 : index
    %96 = vector.load %arg9[%c0_41, %c1859] : memref<2x3380xf32, #tpu.memory_space<vmem>>, vector<1x169xf32>
    tpu.vector_store %arg9[%c0_41, %c1859], %95 {strides = array<i32>} : memref<2x3380xf32, #tpu.memory_space<vmem>>, vector<1x169xf32>,
    %97 = vector.extract_strided_slice %72 {offsets = [12, 0], sizes = [1, 169], strides = [1, 1]} : vector<20x338xf32> to vector<1x169xf32>
    %c0_42 = arith.constant 0 : index
    %c2028 = arith.constant 2028 : index
    %98 = vector.load %arg9[%c0_42, %c2028] : memref<2x3380xf32, #tpu.memory_space<vmem>>, vector<1x169xf32>
    tpu.vector_store %arg9[%c0_42, %c2028], %97 {strides = array<i32>} : memref<2x3380xf32, #tpu.memory_space<vmem>>, vector<1x169xf32>,
    %99 = vector.extract_strided_slice %72 {offsets = [13, 0], sizes = [1, 169], strides = [1, 1]} : vector<20x338xf32> to vector<1x169xf32>
    %c0_43 = arith.constant 0 : index
    %c2197 = arith.constant 2197 : index
    %100 = vector.load %arg9[%c0_43, %c2197] : memref<2x3380xf32, #tpu.memory_space<vmem>>, vector<1x169xf32>
    tpu.vector_store %arg9[%c0_43, %c2197], %99 {strides = array<i32>} : memref<2x3380xf32, #tpu.memory_space<vmem>>, vector<1x169xf32>,
    %101 = vector.extract_strided_slice %72 {offsets = [14, 0], sizes = [1, 169], strides = [1, 1]} : vector<20x338xf32> to vector<1x169xf32>
    %c0_44 = arith.constant 0 : index
    %c2366 = arith.constant 2366 : index
    %102 = vector.load %arg9[%c0_44, %c2366] : memref<2x3380xf32, #tpu.memory_space<vmem>>, vector<1x169xf32>
    tpu.vector_store %arg9[%c0_44, %c2366], %101 {strides = array<i32>} : memref<2x3380xf32, #tpu.memory_space<vmem>>, vector<1x169xf32>,
    %103 = vector.extract_strided_slice %72 {offsets = [15, 0], sizes = [1, 169], strides = [1, 1]} : vector<20x338xf32> to vector<1x169xf32>
    %c0_45 = arith.constant 0 : index
    %c2535 = arith.constant 2535 : index
    %104 = vector.load %arg9[%c0_45, %c2535] : memref<2x3380xf32, #tpu.memory_space<vmem>>, vector<1x169xf32>
    tpu.vector_store %arg9[%c0_45, %c2535], %103 {strides = array<i32>} : memref<2x3380xf32, #tpu.memory_space<vmem>>, vector<1x169xf32>,
    %105 = vector.extract_strided_slice %72 {offsets = [16, 0], sizes = [1, 169], strides = [1, 1]} : vector<20x338xf32> to vector<1x169xf32>
    %c0_46 = arith.constant 0 : index
    %c2704 = arith.constant 2704 : index
    %106 = vector.load %arg9[%c0_46, %c2704] : memref<2x3380xf32, #tpu.memory_space<vmem>>, vector<1x169xf32>
    tpu.vector_store %arg9[%c0_46, %c2704], %105 {strides = array<i32>} : memref<2x3380xf32, #tpu.memory_space<vmem>>, vector<1x169xf32>,
    %107 = vector.extract_strided_slice %72 {offsets = [17, 0], sizes = [1, 169], strides = [1, 1]} : vector<20x338xf32> to vector<1x169xf32>
    %c0_47 = arith.constant 0 : index
    %c2873 = arith.constant 2873 : index
    %108 = vector.load %arg9[%c0_47, %c2873] : memref<2x3380xf32, #tpu.memory_space<vmem>>, vector<1x169xf32>
    tpu.vector_store %arg9[%c0_47, %c2873], %107 {strides = array<i32>} : memref<2x3380xf32, #tpu.memory_space<vmem>>, vector<1x169xf32>,
    %109 = vector.extract_strided_slice %72 {offsets = [18, 0], sizes = [1, 169], strides = [1, 1]} : vector<20x338xf32> to vector<1x169xf32>
    %c0_48 = arith.constant 0 : index
    %c3042 = arith.constant 3042 : index
    %110 = vector.load %arg9[%c0_48, %c3042] : memref<2x3380xf32, #tpu.memory_space<vmem>>, vector<1x169xf32>
    tpu.vector_store %arg9[%c0_48, %c3042], %109 {strides = array<i32>} : memref<2x3380xf32, #tpu.memory_space<vmem>>, vector<1x169xf32>,
    %111 = vector.extract_strided_slice %72 {offsets = [19, 0], sizes = [1, 169], strides = [1, 1]} : vector<20x338xf32> to vector<1x169xf32>
    %c0_49 = arith.constant 0 : index
    %c3211 = arith.constant 3211 : index
    %112 = vector.load %arg9[%c0_49, %c3211] : memref<2x3380xf32, #tpu.memory_space<vmem>>, vector<1x169xf32>
    tpu.vector_store %arg9[%c0_49, %c3211], %111 {strides = array<i32>} : memref<2x3380xf32, #tpu.memory_space<vmem>>, vector<1x169xf32>,
    %113 = vector.extract_strided_slice %72 {offsets = [0, 169], sizes = [1, 169], strides = [1, 1]} : vector<20x338xf32> to vector<1x169xf32>
    %c1_50 = arith.constant 1 : index
    %c0_51 = arith.constant 0 : index
    %114 = vector.load %arg9[%c1_50, %c0_51] : memref<2x3380xf32, #tpu.memory_space<vmem>>, vector<1x169xf32>
    tpu.vector_store %arg9[%c1_50, %c0_51], %113 {strides = array<i32>} : memref<2x3380xf32, #tpu.memory_space<vmem>>, vector<1x169xf32>,
    %115 = vector.extract_strided_slice %72 {offsets = [1, 169], sizes = [1, 169], strides = [1, 1]} : vector<20x338xf32> to vector<1x169xf32>
    %c1_52 = arith.constant 1 : index
    %c169_53 = arith.constant 169 : index
    %116 = vector.load %arg9[%c1_52, %c169_53] : memref<2x3380xf32, #tpu.memory_space<vmem>>, vector<1x169xf32>
    tpu.vector_store %arg9[%c1_52, %c169_53], %115 {strides = array<i32>} : memref<2x3380xf32, #tpu.memory_space<vmem>>, vector<1x169xf32>,
    %117 = vector.extract_strided_slice %72 {offsets = [2, 169], sizes = [1, 169], strides = [1, 1]} : vector<20x338xf32> to vector<1x169xf32>
    %c1_54 = arith.constant 1 : index
    %c338_55 = arith.constant 338 : index
    %118 = vector.load %arg9[%c1_54, %c338_55] : memref<2x3380xf32, #tpu.memory_space<vmem>>, vector<1x169xf32>
    tpu.vector_store %arg9[%c1_54, %c338_55], %117 {strides = array<i32>} : memref<2x3380xf32, #tpu.memory_space<vmem>>, vector<1x169xf32>,
    %119 = vector.extract_strided_slice %72 {offsets = [3, 169], sizes = [1, 169], strides = [1, 1]} : vector<20x338xf32> to vector<1x169xf32>
    %c1_56 = arith.constant 1 : index
    %c507_57 = arith.constant 507 : index
    %120 = vector.load %arg9[%c1_56, %c507_57] : memref<2x3380xf32, #tpu.memory_space<vmem>>, vector<1x169xf32>
    tpu.vector_store %arg9[%c1_56, %c507_57], %119 {strides = array<i32>} : memref<2x3380xf32, #tpu.memory_space<vmem>>, vector<1x169xf32>,
    %121 = vector.extract_strided_slice %72 {offsets = [4, 169], sizes = [1, 169], strides = [1, 1]} : vector<20x338xf32> to vector<1x169xf32>
    %c1_58 = arith.constant 1 : index
    %c676_59 = arith.constant 676 : index
    %122 = vector.load %arg9[%c1_58, %c676_59] : memref<2x3380xf32, #tpu.memory_space<vmem>>, vector<1x169xf32>
    tpu.vector_store %arg9[%c1_58, %c676_59], %121 {strides = array<i32>} : memref<2x3380xf32, #tpu.memory_space<vmem>>, vector<1x169xf32>,
    %123 = vector.extract_strided_slice %72 {offsets = [5, 169], sizes = [1, 169], strides = [1, 1]} : vector<20x338xf32> to vector<1x169xf32>
    %c1_60 = arith.constant 1 : index
    %c845_61 = arith.constant 845 : index
    %124 = vector.load %arg9[%c1_60, %c845_61] : memref<2x3380xf32, #tpu.memory_space<vmem>>, vector<1x169xf32>
    tpu.vector_store %arg9[%c1_60, %c845_61], %123 {strides = array<i32>} : memref<2x3380xf32, #tpu.memory_space<vmem>>, vector<1x169xf32>,
    %125 = vector.extract_strided_slice %72 {offsets = [6, 169], sizes = [1, 169], strides = [1, 1]} : vector<20x338xf32> to vector<1x169xf32>
    %c1_62 = arith.constant 1 : index
    %c1014_63 = arith.constant 1014 : index
    %126 = vector.load %arg9[%c1_62, %c1014_63] : memref<2x3380xf32, #tpu.memory_space<vmem>>, vector<1x169xf32>
    tpu.vector_store %arg9[%c1_62, %c1014_63], %125 {strides = array<i32>} : memref<2x3380xf32, #tpu.memory_space<vmem>>, vector<1x169xf32>,
    %127 = vector.extract_strided_slice %72 {offsets = [7, 169], sizes = [1, 169], strides = [1, 1]} : vector<20x338xf32> to vector<1x169xf32>
    %c1_64 = arith.constant 1 : index
    %c1183_65 = arith.constant 1183 : index
    %128 = vector.load %arg9[%c1_64, %c1183_65] : memref<2x3380xf32, #tpu.memory_space<vmem>>, vector<1x169xf32>
    tpu.vector_store %arg9[%c1_64, %c1183_65], %127 {strides = array<i32>} : memref<2x3380xf32, #tpu.memory_space<vmem>>, vector<1x169xf32>,
    %129 = vector.extract_strided_slice %72 {offsets = [8, 169], sizes = [1, 169], strides = [1, 1]} : vector<20x338xf32> to vector<1x169xf32>
    %c1_66 = arith.constant 1 : index
    %c1352_67 = arith.constant 1352 : index
    %130 = vector.load %arg9[%c1_66, %c1352_67] : memref<2x3380xf32, #tpu.memory_space<vmem>>, vector<1x169xf32>
    tpu.vector_store %arg9[%c1_66, %c1352_67], %129 {strides = array<i32>} : memref<2x3380xf32, #tpu.memory_space<vmem>>, vector<1x169xf32>,
    %131 = vector.extract_strided_slice %72 {offsets = [9, 169], sizes = [1, 169], strides = [1, 1]} : vector<20x338xf32> to vector<1x169xf32>
    %c1_68 = arith.constant 1 : index
    %c1521_69 = arith.constant 1521 : index
    %132 = vector.load %arg9[%c1_68, %c1521_69] : memref<2x3380xf32, #tpu.memory_space<vmem>>, vector<1x169xf32>
    tpu.vector_store %arg9[%c1_68, %c1521_69], %131 {strides = array<i32>} : memref<2x3380xf32, #tpu.memory_space<vmem>>, vector<1x169xf32>,
    %133 = vector.extract_strided_slice %72 {offsets = [10, 169], sizes = [1, 169], strides = [1, 1]} : vector<20x338xf32> to vector<1x169xf32>
    %c1_70 = arith.constant 1 : index
    %c1690_71 = arith.constant 1690 : index
    %134 = vector.load %arg9[%c1_70, %c1690_71] : memref<2x3380xf32, #tpu.memory_space<vmem>>, vector<1x169xf32>
    tpu.vector_store %arg9[%c1_70, %c1690_71], %133 {strides = array<i32>} : memref<2x3380xf32, #tpu.memory_space<vmem>>, vector<1x169xf32>,
    %135 = vector.extract_strided_slice %72 {offsets = [11, 169], sizes = [1, 169], strides = [1, 1]} : vector<20x338xf32> to vector<1x169xf32>
    %c1_72 = arith.constant 1 : index
    %c1859_73 = arith.constant 1859 : index
    %136 = vector.load %arg9[%c1_72, %c1859_73] : memref<2x3380xf32, #tpu.memory_space<vmem>>, vector<1x169xf32>
    tpu.vector_store %arg9[%c1_72, %c1859_73], %135 {strides = array<i32>} : memref<2x3380xf32, #tpu.memory_space<vmem>>, vector<1x169xf32>,
    %137 = vector.extract_strided_slice %72 {offsets = [12, 169], sizes = [1, 169], strides = [1, 1]} : vector<20x338xf32> to vector<1x169xf32>
    %c1_74 = arith.constant 1 : index
    %c2028_75 = arith.constant 2028 : index
    %138 = vector.load %arg9[%c1_74, %c2028_75] : memref<2x3380xf32, #tpu.memory_space<vmem>>, vector<1x169xf32>
    tpu.vector_store %arg9[%c1_74, %c2028_75], %137 {strides = array<i32>} : memref<2x3380xf32, #tpu.memory_space<vmem>>, vector<1x169xf32>,
    %139 = vector.extract_strided_slice %72 {offsets = [13, 169], sizes = [1, 169], strides = [1, 1]} : vector<20x338xf32> to vector<1x169xf32>
    %c1_76 = arith.constant 1 : index
    %c2197_77 = arith.constant 2197 : index
    %140 = vector.load %arg9[%c1_76, %c2197_77] : memref<2x3380xf32, #tpu.memory_space<vmem>>, vector<1x169xf32>
    tpu.vector_store %arg9[%c1_76, %c2197_77], %139 {strides = array<i32>} : memref<2x3380xf32, #tpu.memory_space<vmem>>, vector<1x169xf32>,
    %141 = vector.extract_strided_slice %72 {offsets = [14, 169], sizes = [1, 169], strides = [1, 1]} : vector<20x338xf32> to vector<1x169xf32>
    %c1_78 = arith.constant 1 : index
    %c2366_79 = arith.constant 2366 : index
    %142 = vector.load %arg9[%c1_78, %c2366_79] : memref<2x3380xf32, #tpu.memory_space<vmem>>, vector<1x169xf32>
    tpu.vector_store %arg9[%c1_78, %c2366_79], %141 {strides = array<i32>} : memref<2x3380xf32, #tpu.memory_space<vmem>>, vector<1x169xf32>,
    %143 = vector.extract_strided_slice %72 {offsets = [15, 169], sizes = [1, 169], strides = [1, 1]} : vector<20x338xf32> to vector<1x169xf32>
    %c1_80 = arith.constant 1 : index
    %c2535_81 = arith.constant 2535 : index
    %144 = vector.load %arg9[%c1_80, %c2535_81] : memref<2x3380xf32, #tpu.memory_space<vmem>>, vector<1x169xf32>
    tpu.vector_store %arg9[%c1_80, %c2535_81], %143 {strides = array<i32>} : memref<2x3380xf32, #tpu.memory_space<vmem>>, vector<1x169xf32>,
    %145 = vector.extract_strided_slice %72 {offsets = [16, 169], sizes = [1, 169], strides = [1, 1]} : vector<20x338xf32> to vector<1x169xf32>
    %c1_82 = arith.constant 1 : index
    %c2704_83 = arith.constant 2704 : index
    %146 = vector.load %arg9[%c1_82, %c2704_83] : memref<2x3380xf32, #tpu.memory_space<vmem>>, vector<1x169xf32>
    tpu.vector_store %arg9[%c1_82, %c2704_83], %145 {strides = array<i32>} : memref<2x3380xf32, #tpu.memory_space<vmem>>, vector<1x169xf32>,
    %147 = vector.extract_strided_slice %72 {offsets = [17, 169], sizes = [1, 169], strides = [1, 1]} : vector<20x338xf32> to vector<1x169xf32>
    %c1_84 = arith.constant 1 : index
    %c2873_85 = arith.constant 2873 : index
    %148 = vector.load %arg9[%c1_84, %c2873_85] : memref<2x3380xf32, #tpu.memory_space<vmem>>, vector<1x169xf32>
    tpu.vector_store %arg9[%c1_84, %c2873_85], %147 {strides = array<i32>} : memref<2x3380xf32, #tpu.memory_space<vmem>>, vector<1x169xf32>,
    %149 = vector.extract_strided_slice %72 {offsets = [18, 169], sizes = [1, 169], strides = [1, 1]} : vector<20x338xf32> to vector<1x169xf32>
    %c1_86 = arith.constant 1 : index
    %c3042_87 = arith.constant 3042 : index
    %150 = vector.load %arg9[%c1_86, %c3042_87] : memref<2x3380xf32, #tpu.memory_space<vmem>>, vector<1x169xf32>
    tpu.vector_store %arg9[%c1_86, %c3042_87], %149 {strides = array<i32>} : memref<2x3380xf32, #tpu.memory_space<vmem>>, vector<1x169xf32>,
    %151 = vector.extract_strided_slice %72 {offsets = [19, 169], sizes = [1, 169], strides = [1, 1]} : vector<20x338xf32> to vector<1x169xf32>
    %c1_88 = arith.constant 1 : index
    %c3211_89 = arith.constant 3211 : index
    %152 = vector.load %arg9[%c1_88, %c3211_89] : memref<2x3380xf32, #tpu.memory_space<vmem>>, vector<1x169xf32>
    tpu.vector_store %arg9[%c1_88, %c3211_89], %151 {strides = array<i32>} : memref<2x3380xf32, #tpu.memory_space<vmem>>, vector<1x169xf32>,
    %c0_90 = arith.constant 0 : index
    %c0_91 = arith.constant 0 : index
    %153 = vector.load %arg9[%c0_90, %c0_91] : memref<2x3380xf32, #tpu.memory_space<vmem>>, vector<2x3380xf32>
    %c0_92 = arith.constant 0 : index
    %c0_93 = arith.constant 0 : index
    %154 = vector.load %arg6[%c0_92, %c0_93] : memref<10x3380xf32, #tpu.memory_space<vmem>>, vector<10x3380xf32>
    %cst_94 = arith.constant dense<0.000000e+00> : vector<2x10xf32>
    %155 = tpu.matmul %153, %154, %cst_94 {dimension_numbers = #tpu.dot_dimension_numbers<[1], [1], [0], [0], [0, 0, 1, 0], [], []>} : vector<2x3380xf32>, vector<10x3380xf32>, vector<2x10xf32> -> vector<2x10xf32>
    %c0_95 = arith.constant 0 : index
    %c0_96 = arith.constant 0 : index
    %156 = vector.load %arg7[%c0_95, %c0_96] : memref<1x10xf32, #tpu.memory_space<vmem>>, vector<1x10xf32>
    %157 = vector.broadcast %156 : vector<1x10xf32> to vector<2x10xf32>
    %158 = arith.addf %155, %157 : vector<2x10xf32>
    %c0_97 = arith.constant 0 : index
    %c0_98 = arith.constant 0 : index
    %159 = vector.load %arg8[%c0_97, %c0_98] : memref<2x10xf32, #tpu.memory_space<vmem>>, vector<2x10xf32>
    tpu.vector_store %arg8[%c0_97, %c0_98], %158 {strides = array<i32>} : memref<2x10xf32, #tpu.memory_space<vmem>>, vector<2x10xf32>,
    return
  }
  func.func @transform_0(%arg0: i32) -> (i32, i32, i32) {
    %c0_i32 = arith.constant 0 : i32
    %c0_i32_0 = arith.constant 0 : i32
    %c0_i32_1 = arith.constant 0 : i32
    %c0_i32_2 = arith.constant 0 : i32
    return %c0_i32, %c0_i32_0, %c0_i32_1 : i32, i32, i32
  }
  func.func @transform_1(%arg0: i32) -> (i32, i32) {
    %c0_i32 = arith.constant 0 : i32
    %c0_i32_0 = arith.constant 0 : i32
    %c0_i32_1 = arith.constant 0 : i32
    return %c0_i32, %c0_i32_0 : i32, i32
  }
  func.func @transform_2(%arg0: i32) -> (i32, i32) {
    %c0_i32 = arith.constant 0 : i32
    %c0_i32_0 = arith.constant 0 : i32
    %c0_i32_1 = arith.constant 0 : i32
    return %c0_i32, %c0_i32_0 : i32, i32
  }
  func.func @transform_3(%arg0: i32) -> (i32, i32) {
    %c0_i32 = arith.constant 0 : i32
    %c0_i32_0 = arith.constant 0 : i32
    %c0_i32_1 = arith.constant 0 : i32
    return %c0_i32, %c0_i32_0 : i32, i32
  }
  func.func @transform_4(%arg0: i32) -> (i32, i32) {
    %c0_i32 = arith.constant 0 : i32
    %c0_i32_0 = arith.constant 0 : i32
    %c0_i32_1 = arith.constant 0 : i32
    return %c0_i32, %c0_i32_0 : i32, i32
  }
  func.func @transform_5(%arg0: i32) -> (i32, i32) {
    %c0_i32 = arith.constant 0 : i32
    %c0_i32_0 = arith.constant 0 : i32
    %c0_i32_1 = arith.constant 0 : i32
    return %c0_i32, %c0_i32_0 : i32, i32
  }
  func.func @transform_6(%arg0: i32) -> (i32, i32) {
    %c0_i32 = arith.constant 0 : i32
    %c0_i32_0 = arith.constant 0 : i32
    %c0_i32_1 = arith.constant 0 : i32
    return %c0_i32, %c0_i32_0 : i32, i32
  }
  func.func @transform_7(%arg0: i32) -> (i32, i32) {
    %c0_i32 = arith.constant 0 : i32
    %c0_i32_0 = arith.constant 0 : i32
    %c0_i32_1 = arith.constant 0 : i32
    return %c0_i32, %c0_i32_0 : i32, i32
  }
}

</mosaic_0001>

<llo_original>
// kernel: cnn_forward.1
$region0: #{cnn_forward.1}
  #allocation0 [shape = 'u32[]', space=smem, size = 0x4, offset = 0x4, fixed_abs, tag = 'smem constant byte address 0x4 - core index']
  #allocation1 [shape = 'u32[72,128]{1,0:T(1,128)}', space=vmem, size = 0x9000, scoped, tag = 'internal scratch']
  #allocation2 [shape = 'f32[2,3380]{1,0:T(2,128)}', space=vmem, size = 0x6c00, scoped, tag = 'scratch operand']
  %s0 = inlined_call_operand.vmem [shape: bf16[4,25,338], index: 0, kind: input, shape index: {}]
  %s1 = inlined_call_operand.vmem [shape: bf16[20,25], index: 1, kind: input, shape index: {}]
  %s2 = inlined_call_operand.vmem [shape: f32[20,1], index: 2, kind: input, shape index: {}]
  %s3 = inlined_call_operand.vmem [shape: f32[20,1], index: 3, kind: input, shape index: {}]
  %s4 = inlined_call_operand.vmem [shape: f32[20,1], index: 4, kind: input, shape index: {}]
  %s5 = inlined_call_operand.vmem [shape: f32[10,3380], index: 5, kind: input, shape index: {}]
  %s6 = inlined_call_operand.vmem [shape: f32[1,10], index: 6, kind: input, shape index: {}]
  %s7 = inlined_call_operand.hbm [shape: f32[2,10], index: 7, kind: output, shape index: {}]
  %s8 = sld [smem:[#allocation0]]
  $region38: #{cnn_forward.1} parent=0
    _
  %s10 = ssub.s32 1, %s8
  %s11 = scalar_select 0, %s10, %s8
  $region1: #{cnn_forward.1} parent=0
    #allocation3 [shape = 'u8[1024]{0}', space=vmem, size = 0x400, scoped, tag = 'output window, operand 0, single buffered']
    #allocation4 [shape = 's32[1]{0}', space=sflag, size = 0x4, scoped, tag = 'scoped memory for cnn_forward.1']
    %12 = vsyncpa [#allocation4], 0
    // Predicated region
    $region2: #{cnn_forward.1} parent=1 // pred_check
      _
    $region3: #{cnn_forward.1} parent=1 // pred_check_branch
      %14 = sbr.rel (0) target = $region5
    $region4: #{cnn_forward.1} parent=1 // pred_region
      _
    $region5: #{cnn_forward.1} parent=1 // pred_fallthru
      _
    // Predicated region
    $region6: #{cnn_forward.1} parent=1 // pred_check
      _
    $region7: #{cnn_forward.1} parent=1 // pred_check_branch
      %16 = sbr.rel (0) target = $region9
    $region8: #{cnn_forward.1} parent=1 // pred_region
      _
    $region9: #{cnn_forward.1} parent=1 // pred_fallthru
      _
    // Predicated region
    $region10: #{cnn_forward.1} parent=1 // pred_check
      _
    $region11: #{cnn_forward.1} parent=1 // pred_check_branch
      %18 = sbr.rel (0) target = $region13
    $region12: #{cnn_forward.1} parent=1 // pred_region
      _
    $region13: #{cnn_forward.1} parent=1 // pred_fallthru
      _
    // Predicated region
    $region14: #{cnn_forward.1} parent=1 // pred_check
      _
    $region15: #{cnn_forward.1} parent=1 // pred_check_branch
      %20 = sbr.rel (0) target = $region17
    $region16: #{cnn_forward.1} parent=1 // pred_region
      _
    $region17: #{cnn_forward.1} parent=1 // pred_fallthru
      _
    // Predicated region
    $region18: #{cnn_forward.1} parent=1 // pred_check
      _
    $region19: #{cnn_forward.1} parent=1 // pred_check_branch
      %22 = sbr.rel (0) target = $region21
    $region20: #{cnn_forward.1} parent=1 // pred_region
      _
    $region21: #{cnn_forward.1} parent=1 // pred_fallthru
      _
    // Predicated region
    $region22: #{cnn_forward.1} parent=1 // pred_check
      _
    $region23: #{cnn_forward.1} parent=1 // pred_check_branch
      %24 = sbr.rel (0) target = $region25
    $region24: #{cnn_forward.1} parent=1 // pred_region
      _
    $region25: #{cnn_forward.1} parent=1 // pred_fallthru
      _
    // Predicated region
    $region26: #{cnn_forward.1} parent=1 // pred_check
      _
    $region27: #{cnn_forward.1} parent=1 // pred_check_branch
      %26 = sbr.rel (0) target = $region29
    $region28: #{cnn_forward.1} parent=1 // pred_region
      _
    $region29: #{cnn_forward.1} parent=1 // pred_fallthru
      _
    %v28 = vld [vmem:[%s1] sm:$0xf]
    %v29 = vld [vmem:[%s1 + $0x4] sm:$0xf]
    %v30 = vld [vmem:[%s1 + $0x8] sm:$0x3]
    %v31 = vld [vmem:[%s2] sm:$0xff]
    %v32 = vld [vmem:[%s2 + $0x8] sm:$0xff]
    %v33 = vld [vmem:[%s2 + $0x10] sm:$0xf]
    %v34 = vld [vmem:[%s0] sm:$0xff]
    %v35 = vld [vmem:[%s0 + $0x8] sm:$0xf]
    %v36 = vld [vmem:[%s0 + $0xc] sm:$0xff]
    %v37 = vld [vmem:[%s0 + $0x14] sm:$0xf]
    %v38 = vld [vmem:[%s0 + $0x18] sm:$0xff]
    %v39 = vld [vmem:[%s0 + $0x20] sm:$0xf]
    %v40 = vld [vmem:[%s0 + $0x24] sm:$0x11]
    %v41 = vld [vmem:[%s0 + $0x2c] sm:$0x1]
    %43 = vset.pattern.permute.xlu0 0
    %44 = vperm.xlu0 %43, %v31
    %v45 = vpop.permute.xlu0 %44
    %48 = vset.pattern.permute.xlu0 0
    %49 = vperm.xlu0 %48, %v32
    %v50 = vpop.permute.xlu0 %49
    %53 = vset.pattern.permute.xlu0 0
    %54 = vperm.xlu0 %53, %v33
    %v55 = vpop.permute.xlu0 %54
    %v60 = vunpack.c.l.b16 %v28
    %v61 = vunpack.c.l.b16 %v29
    %v62 = vunpack.c.l.b16 %v30
    %v63 = vpack.c.b16 %v61, %v60
    %v64 = vpack.c.b16 %v62, %v62
    %v73 = vunpack.c.l.b16 %v34
    %v74 = vunpack.c.h.b16 %v34
    %v75 = vunpack.c.l.b16 %v35
    %v76 = vunpack.c.l.b16 %v36
    %v77 = vunpack.c.h.b16 %v36
    %v78 = vunpack.c.l.b16 %v37
    %v79 = vunpack.c.l.b16 %v38
    %v80 = vunpack.c.h.b16 %v38
    %v81 = vunpack.c.l.b16 %v39
    %v82 = vunpack.c.l.b16 %v40
    %v83 = vunpack.c.h.b16 %v40
    %v84 = vunpack.c.l.b16 %v41
    %v85 = vpack.c.b16 %v76, %v73
    %v86 = vpack.c.b16 %v77, %v74
    %v87 = vpack.c.b16 %v78, %v75
    %v88 = vpack.c.b16 %v82, %v79
    %v89 = vpack.c.b16 %v83, %v80
    %v90 = vpack.c.b16 %v84, %v81
    %vm94 = vcmask 203776
    %v96 = vsel %vm94, %v63, 0
    %v99 = vsel %vm94, %v64, 0
    %vm101 = vcmask 1043456
    %vm102 = vcmask 1044480
    %v103 = vsel %vm101, 4294967295, 65535
    %v104 = vsel %vm102, %v103, 0
    %v106 = vand.u32 %v88, %v104
    %v109 = vand.u32 %v89, %v104
    %v112 = vand.u32 %v90, %v104
    %114 = vmatpush.bf16.msra.mxu0 0
    %115 = vmatpush.bf16.msra.mxu0 0
    %116 = vmatpush.bf16.msra.mxu0 0
    %117 = vmatpush.bf16.msra.mxu0 0
    %118 = vmatpush.bf16.msra.mxu0 0
    %119 = vmatpush.bf16.msra.mxu0 0
    %120 = vmatpush.bf16.msra.mxu0 %v106
    %121 = vmatpush.bf16.msra.mxu0 %v85
    %122 = vmatmul.bf16.gmra.mxu0 %v96
    %v123 = vpop.f32.mrf.mxu0
    %v124 = vadd.f32 %v45, %v123
    %v125 = vpop.f32.mrf.mxu0
    %v126 = vadd.f32 %v50, %v125
    %127 = vmatmul.bf16.gmra.mxu0 %v99
    %v128 = vpop.f32.mrf.mxu0
    %v129 = vadd.f32 %v55, %v128
    %v130 = vpop.f32.mrf.mxu0
    %131 = vdwg.mxu0
    %132 = vmatpush.bf16.msra.mxu0 0
    %133 = vmatpush.bf16.msra.mxu0 0
    %134 = vmatpush.bf16.msra.mxu0 0
    %135 = vmatpush.bf16.msra.mxu0 0
    %136 = vmatpush.bf16.msra.mxu0 0
    %137 = vmatpush.bf16.msra.mxu0 0
    %138 = vmatpush.bf16.msra.mxu0 %v109
    %139 = vmatpush.bf16.msra.mxu0 %v86
    %140 = vmatmul.bf16.gmra.mxu0 %v96
    %v141 = vpop.f32.mrf.mxu0
    %v142 = vadd.f32 %v45, %v141
    %v143 = vpop.f32.mrf.mxu0
    %v144 = vadd.f32 %v50, %v143
    %145 = vmatmul.bf16.gmra.mxu0 %v99
    %v146 = vpop.f32.mrf.mxu0
    %v147 = vadd.f32 %v55, %v146
    %v148 = vpop.f32.mrf.mxu0
    %149 = vdwg.mxu0
    %150 = vmatpush.bf16.msra.mxu0 0
    %151 = vmatpush.bf16.msra.mxu0 0
    %152 = vmatpush.bf16.msra.mxu0 0
    %153 = vmatpush.bf16.msra.mxu0 0
    %154 = vmatpush.bf16.msra.mxu0 0
    %155 = vmatpush.bf16.msra.mxu0 0
    %156 = vmatpush.bf16.msra.mxu0 %v112
    %157 = vmatpush.bf16.msra.mxu0 %v87
    %158 = vmatmul.bf16.gmra.mxu0 %v96
    %v159 = vpop.f32.mrf.mxu0
    %v160 = vadd.f32 %v45, %v159
    %v161 = vpop.f32.mrf.mxu0
    %v162 = vadd.f32 %v50, %v161
    %163 = vmatmul.bf16.gmra.mxu0 %v99
    %v164 = vpop.f32.mrf.mxu0
    %v165 = vadd.f32 %v55, %v164
    %v166 = vpop.f32.mrf.mxu0
    %167 = vdwg.mxu0
    %v168 = vmax.f32 %v124, 0.0
    %v169 = vmax.f32 %v142, 0.0
    %v170 = vmax.f32 %v160, 0.0
    %v171 = vmax.f32 %v126, 0.0
    %v172 = vmax.f32 %v144, 0.0
    %v173 = vmax.f32 %v162, 0.0
    %v174 = vmax.f32 %v129, 0.0
    %v175 = vmax.f32 %v147, 0.0
    %v176 = vmax.f32 %v165, 0.0
    %v177 = vmul.f32 %v168, %v168
    %v178 = vmul.f32 %v169, %v169
    %v179 = vmul.f32 %v170, %v170
    %v180 = vmul.f32 %v171, %v171
    %v181 = vmul.f32 %v172, %v172
    %v182 = vmul.f32 %v173, %v173
    %v183 = vmul.f32 %v174, %v174
    %v184 = vmul.f32 %v175, %v175
    %v185 = vmul.f32 %v176, %v176
    %s186 = scalar_lea.vmem %s0, 48
    %v187 = vld [vmem:[%s186] sm:$0xff]
    %v188 = vld [vmem:[%s186 + $0x8] sm:$0xf]
    %v189 = vld [vmem:[%s186 + $0xc] sm:$0xff]
    %v190 = vld [vmem:[%s186 + $0x14] sm:$0xf]
    %v191 = vld [vmem:[%s186 + $0x18] sm:$0xff]
    %v192 = vld [vmem:[%s186 + $0x20] sm:$0xf]
    %v193 = vld [vmem:[%s186 + $0x24] sm:$0x11]
    %v194 = vld [vmem:[%s186 + $0x2c] sm:$0x1]
    %v203 = vunpack.c.l.b16 %v187
    %v204 = vunpack.c.h.b16 %v187
    %v205 = vunpack.c.l.b16 %v188
    %v206 = vunpack.c.l.b16 %v189
    %v207 = vunpack.c.h.b16 %v189
    %v208 = vunpack.c.l.b16 %v190
    %v209 = vunpack.c.l.b16 %v191
    %v210 = vunpack.c.h.b16 %v191
    %v211 = vunpack.c.l.b16 %v192
    %v212 = vunpack.c.l.b16 %v193
    %v213 = vunpack.c.h.b16 %v193
    %v214 = vunpack.c.l.b16 %v194
    %v215 = vpack.c.b16 %v206, %v203
    %v216 = vpack.c.b16 %v207, %v204
    %v217 = vpack.c.b16 %v208, %v205
    %v218 = vpack.c.b16 %v212, %v209
    %v219 = vpack.c.b16 %v213, %v210
    %v220 = vpack.c.b16 %v214, %v211
    %v225 = vand.u32 %v218, %v104
    %v228 = vand.u32 %v219, %v104
    %v231 = vand.u32 %v220, %v104
    %233 = vmatpush.bf16.msra.mxu0 0
    %234 = vmatpush.bf16.msra.mxu0 0
    %235 = vmatpush.bf16.msra.mxu0 0
    %236 = vmatpush.bf16.msra.mxu0 0
    %237 = vmatpush.bf16.msra.mxu0 0
    %238 = vmatpush.bf16.msra.mxu0 0
    %239 = vmatpush.bf16.msra.mxu0 %v225
    %240 = vmatpush.bf16.msra.mxu0 %v215
    %241 = vmatmul.bf16.gmra.mxu0 %v96
    %v242 = vpop.f32.mrf.mxu0
    %v243 = vadd.f32 %v45, %v242
    %v244 = vpop.f32.mrf.mxu0
    %v245 = vadd.f32 %v50, %v244
    %246 = vmatmul.bf16.gmra.mxu0 %v99
    %v247 = vpop.f32.mrf.mxu0
    %v248 = vadd.f32 %v55, %v247
    %v249 = vpop.f32.mrf.mxu0
    %250 = vdwg.mxu0
    %251 = vmatpush.bf16.msra.mxu0 0
    %252 = vmatpush.bf16.msra.mxu0 0
    %253 = vmatpush.bf16.msra.mxu0 0
    %254 = vmatpush.bf16.msra.mxu0 0
    %255 = vmatpush.bf16.msra.mxu0 0
    %256 = vmatpush.bf16.msra.mxu0 0
    %257 = vmatpush.bf16.msra.mxu0 %v228
    %258 = vmatpush.bf16.msra.mxu0 %v216
    %259 = vmatmul.bf16.gmra.mxu0 %v96
    %v260 = vpop.f32.mrf.mxu0
    %v261 = vadd.f32 %v45, %v260
    %v262 = vpop.f32.mrf.mxu0
    %v263 = vadd.f32 %v50, %v262
    %264 = vmatmul.bf16.gmra.mxu0 %v99
    %v265 = vpop.f32.mrf.mxu0
    %v266 = vadd.f32 %v55, %v265
    %v267 = vpop.f32.mrf.mxu0
    %268 = vdwg.mxu0
    %269 = vmatpush.bf16.msra.mxu0 0
    %270 = vmatpush.bf16.msra.mxu0 0
    %271 = vmatpush.bf16.msra.mxu0 0
    %272 = vmatpush.bf16.msra.mxu0 0
    %273 = vmatpush.bf16.msra.mxu0 0
    %274 = vmatpush.bf16.msra.mxu0 0
    %275 = vmatpush.bf16.msra.mxu0 %v231
    %276 = vmatpush.bf16.msra.mxu0 %v217
    %277 = vmatmul.bf16.gmra.mxu0 %v96
    %v278 = vpop.f32.mrf.mxu0
    %v279 = vadd.f32 %v45, %v278
    %v280 = vpop.f32.mrf.mxu0
    %v281 = vadd.f32 %v50, %v280
    %282 = vmatmul.bf16.gmra.mxu0 %v99
    %v283 = vpop.f32.mrf.mxu0
    %v284 = vadd.f32 %v55, %v283
    %v285 = vpop.f32.mrf.mxu0
    %286 = vdwg.mxu0
    %v287 = vmax.f32 %v243, 0.0
    %v288 = vmax.f32 %v261, 0.0
    %v289 = vmax.f32 %v279, 0.0
    %v290 = vmax.f32 %v245, 0.0
    %v291 = vmax.f32 %v263, 0.0
    %v292 = vmax.f32 %v281, 0.0
    %v293 = vmax.f32 %v248, 0.0
    %v294 = vmax.f32 %v266, 0.0
    %v295 = vmax.f32 %v284, 0.0
    %v296 = vadd.f32 %v168, %v287
    %v297 = vadd.f32 %v169, %v288
    %v298 = vadd.f32 %v170, %v289
    %v299 = vadd.f32 %v171, %v290
    %v300 = vadd.f32 %v172, %v291
    %v301 = vadd.f32 %v173, %v292
    %v302 = vadd.f32 %v174, %v293
    %v303 = vadd.f32 %v175, %v294
    %v304 = vadd.f32 %v176, %v295
    %v305 = vmul.f32 %v287, %v287
    %v306 = vmul.f32 %v288, %v288
    %v307 = vmul.f32 %v289, %v289
    %v308 = vmul.f32 %v290, %v290
    %v309 = vmul.f32 %v291, %v291
    %v310 = vmul.f32 %v292, %v292
    %v311 = vmul.f32 %v293, %v293
    %v312 = vmul.f32 %v294, %v294
    %v313 = vmul.f32 %v295, %v295
    %v314 = vadd.f32 %v177, %v305
    %v315 = vadd.f32 %v178, %v306
    %v316 = vadd.f32 %v179, %v307
    %v317 = vadd.f32 %v180, %v308
    %v318 = vadd.f32 %v181, %v309
    %v319 = vadd.f32 %v182, %v310
    %v320 = vadd.f32 %v183, %v311
    %v321 = vadd.f32 %v184, %v312
    %v322 = vadd.f32 %v185, %v313
    %v323 = vmax.f32 %v168, %v287
    %v324 = vmax.f32 %v169, %v288
    %v325 = vmax.f32 %v170, %v289
    %v326 = vmax.f32 %v171, %v290
    %v327 = vmax.f32 %v172, %v291
    %v328 = vmax.f32 %v173, %v292
    %v329 = vmax.f32 %v174, %v293
    %v330 = vmax.f32 %v175, %v294
    %v331 = vmax.f32 %v176, %v295
    %v332 = vmin.f32 %v168, %v287
    %v333 = vmin.f32 %v169, %v288
    %v334 = vmin.f32 %v170, %v289
    %v335 = vmin.f32 %v171, %v290
    %v336 = vmin.f32 %v172, %v291
    %v337 = vmin.f32 %v173, %v292
    %v338 = vmin.f32 %v174, %v293
    %v339 = vmin.f32 %v175, %v294
    %v340 = vmin.f32 %v176, %v295
    %s341 = scalar_lea.vmem %s0, 96
    %v342 = vld [vmem:[%s341] sm:$0xff]
    %v343 = vld [vmem:[%s341 + $0x8] sm:$0xf]
    %v344 = vld [vmem:[%s341 + $0xc] sm:$0xff]
    %v345 = vld [vmem:[%s341 + $0x14] sm:$0xf]
    %v346 = vld [vmem:[%s341 + $0x18] sm:$0xff]
    %v347 = vld [vmem:[%s341 + $0x20] sm:$0xf]
    %v348 = vld [vmem:[%s341 + $0x24] sm:$0x11]
    %v349 = vld [vmem:[%s341 + $0x2c] sm:$0x1]
    %v358 = vunpack.c.l.b16 %v342
    %v359 = vunpack.c.h.b16 %v342
    %v360 = vunpack.c.l.b16 %v343
    %v361 = vunpack.c.l.b16 %v344
    %v362 = vunpack.c.h.b16 %v344
    %v363 = vunpack.c.l.b16 %v345
    %v364 = vunpack.c.l.b16 %v346
    %v365 = vunpack.c.h.b16 %v346
    %v366 = vunpack.c.l.b16 %v347
    %v367 = vunpack.c.l.b16 %v348
    %v368 = vunpack.c.h.b16 %v348
    %v369 = vunpack.c.l.b16 %v349
    %v370 = vpack.c.b16 %v361, %v358
    %v371 = vpack.c.b16 %v362, %v359
    %v372 = vpack.c.b16 %v363, %v360
    %v373 = vpack.c.b16 %v367, %v364
    %v374 = vpack.c.b16 %v368, %v365
    %v375 = vpack.c.b16 %v369, %v366
    %v380 = vand.u32 %v373, %v104
    %v383 = vand.u32 %v374, %v104
    %v386 = vand.u32 %v375, %v104
    %388 = vmatpush.bf16.msra.mxu0 0
    %389 = vmatpush.bf16.msra.mxu0 0
    %390 = vmatpush.bf16.msra.mxu0 0
    %391 = vmatpush.bf16.msra.mxu0 0
    %392 = vmatpush.bf16.msra.mxu0 0
    %393 = vmatpush.bf16.msra.mxu0 0
    %394 = vmatpush.bf16.msra.mxu0 %v380
    %395 = vmatpush.bf16.msra.mxu0 %v370
    %396 = vmatmul.bf16.gmra.mxu0 %v96
    %v397 = vpop.f32.mrf.mxu0
    %v398 = vadd.f32 %v45, %v397
    %v399 = vpop.f32.mrf.mxu0
    %v400 = vadd.f32 %v50, %v399
    %401 = vmatmul.bf16.gmra.mxu0 %v99
    %v402 = vpop.f32.mrf.mxu0
    %v403 = vadd.f32 %v55, %v402
    %v404 = vpop.f32.mrf.mxu0
    %405 = vdwg.mxu0
    %406 = vmatpush.bf16.msra.mxu0 0
    %407 = vmatpush.bf16.msra.mxu0 0
    %408 = vmatpush.bf16.msra.mxu0 0
    %409 = vmatpush.bf16.msra.mxu0 0
    %410 = vmatpush.bf16.msra.mxu0 0
    %411 = vmatpush.bf16.msra.mxu0 0
    %412 = vmatpush.bf16.msra.mxu0 %v383
    %413 = vmatpush.bf16.msra.mxu0 %v371
    %414 = vmatmul.bf16.gmra.mxu0 %v96
    %v415 = vpop.f32.mrf.mxu0
    %v416 = vadd.f32 %v45, %v415
    %v417 = vpop.f32.mrf.mxu0
    %v418 = vadd.f32 %v50, %v417
    %419 = vmatmul.bf16.gmra.mxu0 %v99
    %v420 = vpop.f32.mrf.mxu0
    %v421 = vadd.f32 %v55, %v420
    %v422 = vpop.f32.mrf.mxu0
    %423 = vdwg.mxu0
    %424 = vmatpush.bf16.msra.mxu0 0
    %425 = vmatpush.bf16.msra.mxu0 0
    %426 = vmatpush.bf16.msra.mxu0 0
    %427 = vmatpush.bf16.msra.mxu0 0
    %428 = vmatpush.bf16.msra.mxu0 0
    %429 = vmatpush.bf16.msra.mxu0 0
    %430 = vmatpush.bf16.msra.mxu0 %v386
    %431 = vmatpush.bf16.msra.mxu0 %v372
    %432 = vmatmul.bf16.gmra.mxu0 %v96
    %v433 = vpop.f32.mrf.mxu0
    %v434 = vadd.f32 %v45, %v433
    %v435 = vpop.f32.mrf.mxu0
    %v436 = vadd.f32 %v50, %v435
    %437 = vmatmul.bf16.gmra.mxu0 %v99
    %v438 = vpop.f32.mrf.mxu0
    %v439 = vadd.f32 %v55, %v438
    %v440 = vpop.f32.mrf.mxu0
    %441 = vdwg.mxu0
    %v442 = vmax.f32 %v398, 0.0
    %v443 = vmax.f32 %v416, 0.0
    %v444 = vmax.f32 %v434, 0.0
    %v445 = vmax.f32 %v400, 0.0
    %v446 = vmax.f32 %v418, 0.0
    %v447 = vmax.f32 %v436, 0.0
    %v448 = vmax.f32 %v403, 0.0
    %v449 = vmax.f32 %v421, 0.0
    %v450 = vmax.f32 %v439, 0.0
    %v451 = vadd.f32 %v296, %v442
    %v452 = vadd.f32 %v297, %v443
    %v453 = vadd.f32 %v298, %v444
    %v454 = vadd.f32 %v299, %v445
    %v455 = vadd.f32 %v300, %v446
    %v456 = vadd.f32 %v301, %v447
    %v457 = vadd.f32 %v302, %v448
    %v458 = vadd.f32 %v303, %v449
    %v459 = vadd.f32 %v304, %v450
    %v460 = vmul.f32 %v442, %v442
    %v461 = vmul.f32 %v443, %v443
    %v462 = vmul.f32 %v444, %v444
    %v463 = vmul.f32 %v445, %v445
    %v464 = vmul.f32 %v446, %v446
    %v465 = vmul.f32 %v447, %v447
    %v466 = vmul.f32 %v448, %v448
    %v467 = vmul.f32 %v449, %v449
    %v468 = vmul.f32 %v450, %v450
    %v469 = vadd.f32 %v314, %v460
    %v470 = vadd.f32 %v315, %v461
    %v471 = vadd.f32 %v316, %v462
    %v472 = vadd.f32 %v317, %v463
    %v473 = vadd.f32 %v318, %v464
    %v474 = vadd.f32 %v319, %v465
    %v475 = vadd.f32 %v320, %v466
    %v476 = vadd.f32 %v321, %v467
    %v477 = vadd.f32 %v322, %v468
    %v478 = vmax.f32 %v323, %v442
    %v479 = vmax.f32 %v324, %v443
    %v480 = vmax.f32 %v325, %v444
    %v481 = vmax.f32 %v326, %v445
    %v482 = vmax.f32 %v327, %v446
    %v483 = vmax.f32 %v328, %v447
    %v484 = vmax.f32 %v329, %v448
    %v485 = vmax.f32 %v330, %v449
    %v486 = vmax.f32 %v331, %v450
    %v487 = vmin.f32 %v332, %v442
    %v488 = vmin.f32 %v333, %v443
    %v489 = vmin.f32 %v334, %v444
    %v490 = vmin.f32 %v335, %v445
    %v491 = vmin.f32 %v336, %v446
    %v492 = vmin.f32 %v337, %v447
    %v493 = vmin.f32 %v338, %v448
    %v494 = vmin.f32 %v339, %v449
    %v495 = vmin.f32 %v340, %v450
    %s496 = scalar_lea.vmem %s0, 144
    %v497 = vld [vmem:[%s496] sm:$0xff]
    %v498 = vld [vmem:[%s496 + $0x8] sm:$0xf]
    %v499 = vld [vmem:[%s496 + $0xc] sm:$0xff]
    %v500 = vld [vmem:[%s496 + $0x14] sm:$0xf]
    %v501 = vld [vmem:[%s496 + $0x18] sm:$0xff]
    %v502 = vld [vmem:[%s496 + $0x20] sm:$0xf]
    %v503 = vld [vmem:[%s496 + $0x24] sm:$0x11]
    %v504 = vld [vmem:[%s496 + $0x2c] sm:$0x1]
    %v513 = vunpack.c.l.b16 %v497
    %v514 = vunpack.c.h.b16 %v497
    %v515 = vunpack.c.l.b16 %v498
    %v516 = vunpack.c.l.b16 %v499
    %v517 = vunpack.c.h.b16 %v499
    %v518 = vunpack.c.l.b16 %v500
    %v519 = vunpack.c.l.b16 %v501
    %v520 = vunpack.c.h.b16 %v501
    %v521 = vunpack.c.l.b16 %v502
    %v522 = vunpack.c.l.b16 %v503
    %v523 = vunpack.c.h.b16 %v503
    %v524 = vunpack.c.l.b16 %v504
    %v525 = vpack.c.b16 %v516, %v513
    %v526 = vpack.c.b16 %v517, %v514
    %v527 = vpack.c.b16 %v518, %v515
    %v528 = vpack.c.b16 %v522, %v519
    %v529 = vpack.c.b16 %v523, %v520
    %v530 = vpack.c.b16 %v524, %v521
    %v535 = vand.u32 %v528, %v104
    %v538 = vand.u32 %v529, %v104
    %v541 = vand.u32 %v530, %v104
    %543 = vmatpush.bf16.msra.mxu0 0
    %544 = vmatpush.bf16.msra.mxu0 0
    %545 = vmatpush.bf16.msra.mxu0 0
    %546 = vmatpush.bf16.msra.mxu0 0
    %547 = vmatpush.bf16.msra.mxu0 0
    %548 = vmatpush.bf16.msra.mxu0 0
    %549 = vmatpush.bf16.msra.mxu0 %v535
    %550 = vmatpush.bf16.msra.mxu0 %v525
    %551 = vmatmul.bf16.gmra.mxu0 %v96
    %v552 = vpop.f32.mrf.mxu0
    %v553 = vadd.f32 %v45, %v552
    %v554 = vpop.f32.mrf.mxu0
    %v555 = vadd.f32 %v50, %v554
    %556 = vmatmul.bf16.gmra.mxu0 %v99
    %v557 = vpop.f32.mrf.mxu0
    %v558 = vadd.f32 %v55, %v557
    %v559 = vpop.f32.mrf.mxu0
    %560 = vdwg.mxu0
    %561 = vmatpush.bf16.msra.mxu0 0
    %562 = vmatpush.bf16.msra.mxu0 0
    %563 = vmatpush.bf16.msra.mxu0 0
    %564 = vmatpush.bf16.msra.mxu0 0
    %565 = vmatpush.bf16.msra.mxu0 0
    %566 = vmatpush.bf16.msra.mxu0 0
    %567 = vmatpush.bf16.msra.mxu0 %v538
    %568 = vmatpush.bf16.msra.mxu0 %v526
    %569 = vmatmul.bf16.gmra.mxu0 %v96
    %v570 = vpop.f32.mrf.mxu0
    %v571 = vadd.f32 %v45, %v570
    %v572 = vpop.f32.mrf.mxu0
    %v573 = vadd.f32 %v50, %v572
    %574 = vmatmul.bf16.gmra.mxu0 %v99
    %v575 = vpop.f32.mrf.mxu0
    %v576 = vadd.f32 %v55, %v575
    %v577 = vpop.f32.mrf.mxu0
    %578 = vdwg.mxu0
    %579 = vmatpush.bf16.msra.mxu0 0
    %580 = vmatpush.bf16.msra.mxu0 0
    %581 = vmatpush.bf16.msra.mxu0 0
    %582 = vmatpush.bf16.msra.mxu0 0
    %583 = vmatpush.bf16.msra.mxu0 0
    %584 = vmatpush.bf16.msra.mxu0 0
    %585 = vmatpush.bf16.msra.mxu0 %v541
    %586 = vmatpush.bf16.msra.mxu0 %v527
    %587 = vmatmul.bf16.gmra.mxu0 %v96
    %v588 = vpop.f32.mrf.mxu0
    %v589 = vadd.f32 %v45, %v588
    %v590 = vpop.f32.mrf.mxu0
    %v591 = vadd.f32 %v50, %v590
    %592 = vmatmul.bf16.gmra.mxu0 %v99
    %v593 = vpop.f32.mrf.mxu0
    %v594 = vadd.f32 %v55, %v593
    %v595 = vpop.f32.mrf.mxu0
    %596 = vdwg.mxu0
    %v597 = vmax.f32 %v553, 0.0
    %v598 = vmax.f32 %v571, 0.0
    %v599 = vmax.f32 %v589, 0.0
    %v600 = vmax.f32 %v555, 0.0
    %v601 = vmax.f32 %v573, 0.0
    %v602 = vmax.f32 %v591, 0.0
    %v603 = vmax.f32 %v558, 0.0
    %v604 = vmax.f32 %v576, 0.0
    %v605 = vmax.f32 %v594, 0.0
    %v606 = vadd.f32 %v451, %v597
    %v607 = vadd.f32 %v452, %v598
    %v608 = vadd.f32 %v453, %v599
    %v609 = vadd.f32 %v454, %v600
    %v610 = vadd.f32 %v455, %v601
    %v611 = vadd.f32 %v456, %v602
    %v612 = vadd.f32 %v457, %v603
    %v613 = vadd.f32 %v458, %v604
    %v614 = vadd.f32 %v459, %v605
    %v615 = vmul.f32 %v597, %v597
    %v616 = vmul.f32 %v598, %v598
    %v617 = vmul.f32 %v599, %v599
    %v618 = vmul.f32 %v600, %v600
    %v619 = vmul.f32 %v601, %v601
    %v620 = vmul.f32 %v602, %v602
    %v621 = vmul.f32 %v603, %v603
    %v622 = vmul.f32 %v604, %v604
    %v623 = vmul.f32 %v605, %v605
    %v624 = vadd.f32 %v469, %v615
    %v625 = vadd.f32 %v470, %v616
    %v626 = vadd.f32 %v471, %v617
    %v627 = vadd.f32 %v472, %v618
    %v628 = vadd.f32 %v473, %v619
    %v629 = vadd.f32 %v474, %v620
    %v630 = vadd.f32 %v475, %v621
    %v631 = vadd.f32 %v476, %v622
    %v632 = vadd.f32 %v477, %v623
    %v633 = vmax.f32 %v478, %v597
    %v634 = vmax.f32 %v479, %v598
    %v635 = vmax.f32 %v480, %v599
    %v636 = vmax.f32 %v481, %v600
    %v637 = vmax.f32 %v482, %v601
    %v638 = vmax.f32 %v483, %v602
    %v639 = vmax.f32 %v484, %v603
    %v640 = vmax.f32 %v485, %v604
    %v641 = vmax.f32 %v486, %v605
    %v642 = vmin.f32 %v487, %v597
    %v643 = vmin.f32 %v488, %v598
    %v644 = vmin.f32 %v489, %v599
    %v645 = vmin.f32 %v490, %v600
    %v646 = vmin.f32 %v491, %v601
    %v647 = vmin.f32 %v492, %v602
    %v648 = vmin.f32 %v493, %v603
    %v649 = vmin.f32 %v494, %v604
    %v650 = vmin.f32 %v495, %v605
    %v651 = vadd.f32 %v606, %v607
    %vm652 = vcmask 670720
    %v653 = vsel %vm652, %v608, 0.0
    %v654 = vadd.f32 %v651, %v653
    %655 = vadd.xlane.f32.xlu0 %v654
    %v656 = vpop.xlane.xlu0 %655
    %v657 = vadd.f32 %v609, %v610
    %v658 = vsel %vm652, %v611, 0.0
    %v659 = vadd.f32 %v657, %v658
    %660 = vadd.xlane.f32.xlu0 %v659
    %v661 = vpop.xlane.xlu0 %660
    %v662 = vsel %vm101, %v612, 0.0
    %v663 = vsel %vm101, %v613, 0.0
    %v664 = vadd.f32 %v662, %v663
    %vm665 = vcmask 666624
    %v666 = vsel %vm665, %v614, 0.0
    %v667 = vadd.f32 %v664, %v666
    %668 = vadd.xlane.f32.xlu0 %v667
    %v669 = vpop.xlane.xlu0 %668
    %v670 = vrcp.pop 1352.0
    %v671 = vmul.f32 1352.0, %v670
    %v672 = vsub.f32 1.0, %v671
    %v673 = vmul.f32 %v670, %v672
    %v674 = vadd.f32 %v670, %v673
    %vm675 = vweird.f32 %v670
    %v676 = vsel %vm675, %v670, %v674
    %v677 = vmul.f32 %v656, %v676
    %v678 = vmul.f32 %v661, %v676
    %v679 = vmul.f32 %v669, %v676
    %v680 = vadd.f32 %v624, %v625
    %v681 = vsel %vm652, %v626, 0.0
    %v682 = vadd.f32 %v680, %v681
    %683 = vadd.xlane.f32.xlu0 %v682
    %v684 = vpop.xlane.xlu0 %683
    %v685 = vadd.f32 %v627, %v628
    %v686 = vsel %vm652, %v629, 0.0
    %v687 = vadd.f32 %v685, %v686
    %688 = vadd.xlane.f32.xlu0 %v687
    %v689 = vpop.xlane.xlu0 %688
    %v690 = vsel %vm101, %v630, 0.0
    %v691 = vsel %vm101, %v631, 0.0
    %v692 = vadd.f32 %v690, %v691
    %v693 = vsel %vm665, %v632, 0.0
    %v694 = vadd.f32 %v692, %v693
    %695 = vadd.xlane.f32.xlu0 %v694
    %v696 = vpop.xlane.xlu0 %695
    %v697 = vmul.f32 %v684, %v676
    %v698 = vmul.f32 %v689, %v676
    %v699 = vmul.f32 %v696, %v676
    %v700 = vmul.f32 %v677, %v677
    %v701 = vmul.f32 %v678, %v678
    %v702 = vmul.f32 %v679, %v679
    %v703 = vsub.f32 %v697, %v700
    %v704 = vsub.f32 %v698, %v701
    %v705 = vsub.f32 %v699, %v702
    %v706 = vmax.f32 %v703, 0.0
    %v707 = vmax.f32 %v704, 0.0
    %v708 = vmax.f32 %v705, 0.0
    %v709 = vadd.f32 %v706, 1e-05
    %v710 = vadd.f32 %v707, 1e-05
    %v711 = vadd.f32 %v708, 1e-05
    %v712 = vrsqrt.pop %v709
    %v713 = vmul.f32 %v712, %v709
    %v714 = vmul.f32 %v713, %v712
    %v715 = vmul.f32 0.5, %v714
    %v716 = vsub.f32 1.5, %v715
    %v717 = vmul.f32 %v712, %v716
    %vm718 = vweird.f32 %v709
    %vm719 = vweird.f32 %v712
    %vm720 = vmor %vm718, %vm719
    %v721 = vsel %vm720, %v712, %v717
    %v722 = vrsqrt.pop %v710
    %v723 = vmul.f32 %v722, %v710
    %v724 = vmul.f32 %v723, %v722
    %v725 = vmul.f32 0.5, %v724
    %v726 = vsub.f32 1.5, %v725
    %v727 = vmul.f32 %v722, %v726
    %vm728 = vweird.f32 %v710
    %vm729 = vweird.f32 %v722
    %vm730 = vmor %vm728, %vm729
    %v731 = vsel %vm730, %v722, %v727
    %v732 = vrsqrt.pop %v711
    %v733 = vmul.f32 %v732, %v711
    %v734 = vmul.f32 %v733, %v732
    %v735 = vmul.f32 0.5, %v734
    %v736 = vsub.f32 1.5, %v735
    %v737 = vmul.f32 %v732, %v736
    %vm738 = vweird.f32 %v711
    %vm739 = vweird.f32 %v732
    %vm740 = vmor %vm738, %vm739
    %v741 = vsel %vm740, %v732, %v737
    %v742 = vld [vmem:[%s3] sm:$0xff]
    %v743 = vld [vmem:[%s3 + $0x8] sm:$0xff]
    %v744 = vld [vmem:[%s3 + $0x10] sm:$0xf]
    %v745 = vmul.f32 %v742, %v721
    %v746 = vmul.f32 %v743, %v731
    %v747 = vmul.f32 %v744, %v741
    %v748 = vld [vmem:[%s4] sm:$0xff]
    %v749 = vld [vmem:[%s4 + $0x8] sm:$0xff]
    %v750 = vld [vmem:[%s4 + $0x10] sm:$0xf]
    %v751 = vmul.f32 %v677, %v745
    %v752 = vmul.f32 %v678, %v746
    %v753 = vmul.f32 %v679, %v747
    %v754 = vsub.f32 %v748, %v751
    %v755 = vsub.f32 %v749, %v752
    %v756 = vsub.f32 %v750, %v753
    %758 = vset.pattern.permute.xlu0 0
    %759 = vperm.xlu0 %758, %v745
    %v760 = vpop.permute.xlu0 %759
    %763 = vset.pattern.permute.xlu0 0
    %764 = vperm.xlu0 %763, %v746
    %v765 = vpop.permute.xlu0 %764
    %768 = vset.pattern.permute.xlu0 0
    %769 = vperm.xlu0 %768, %v747
    %v770 = vpop.permute.xlu0 %769
    %v772 = vmul.f32 %v633, %v760
    %v773 = vmul.f32 %v634, %v760
    %v774 = vmul.f32 %v635, %v760
    %v775 = vmul.f32 %v636, %v765
    %v776 = vmul.f32 %v637, %v765
    %v777 = vmul.f32 %v638, %v765
    %v778 = vmul.f32 %v639, %v770
    %v779 = vmul.f32 %v640, %v770
    %v780 = vmul.f32 %v641, %v770
    %v781 = vmul.f32 %v642, %v760
    %v782 = vmul.f32 %v643, %v760
    %v783 = vmul.f32 %v644, %v760
    %v784 = vmul.f32 %v645, %v765
    %v785 = vmul.f32 %v646, %v765
    %v786 = vmul.f32 %v647, %v765
    %v787 = vmul.f32 %v648, %v770
    %v788 = vmul.f32 %v649, %v770
    %v789 = vmul.f32 %v650, %v770
    %v790 = vmax.f32 %v772, %v781
    %v791 = vmax.f32 %v773, %v782
    %v792 = vmax.f32 %v774, %v783
    %v793 = vmax.f32 %v775, %v784
    %v794 = vmax.f32 %v776, %v785
    %v795 = vmax.f32 %v777, %v786
    %v796 = vmax.f32 %v778, %v787
    %v797 = vmax.f32 %v779, %v788
    %v798 = vmax.f32 %v780, %v789
    %800 = vset.pattern.permute.xlu0 0
    %801 = vperm.xlu0 %800, %v754
    %v802 = vpop.permute.xlu0 %801
    %805 = vset.pattern.permute.xlu0 0
    %806 = vperm.xlu0 %805, %v755
    %v807 = vpop.permute.xlu0 %806
    %810 = vset.pattern.permute.xlu0 0
    %811 = vperm.xlu0 %810, %v756
    %v812 = vpop.permute.xlu0 %811
    %v814 = vadd.f32 %v790, %v802
    %v815 = vadd.f32 %v791, %v802
    %v816 = vadd.f32 %v792, %v802
    %v817 = vadd.f32 %v793, %v807
    %v818 = vadd.f32 %v794, %v807
    %v819 = vadd.f32 %v795, %v807
    %v820 = vadd.f32 %v796, %v812
    %v821 = vadd.f32 %v797, %v812
    %v822 = vadd.f32 %v798, %v812
    %v825 = vrot.slane %v815, 7
    %vm826 = vcmask 1040384
    %v827 = vsel %vm826, %v814, %v825
    %v829 = vlaneseq
    %vm830 = vcmp.ge.s32.totalorder %v829, 0
    %vm831 = vcmp.lt.s32.totalorder %v829, 169
    %vm832 = vmand %vm830, %vm831
    %833 = vst.msk [vmem:[#allocation2] ss:$2 sm:$0x3] %vm832, %v827
    %834 = vst [vmem:[#allocation1] sm:$0xff] %v814
    %835 = vst [vmem:[#allocation1 + $0x9] sm:$0xff] %v815
    %s836 = scalar_lea.vmem [#allocation1], 1
    %v837 = vld [vmem:[%s836] ss:$9 sm:$0xff]
    %838 = vrot.lane.b32.xlu0 %v837, 41
    %v839 = vpop.permute.xlu0 %838
    %v840 = vrot.slane %v839, 7
    %vm841 = vcmask 334848
    %v842 = vsel %vm841, %v840, %v839
    %vm844 = vcmp.ge.s32.totalorder %v829, 41
    %vm845 = vcmp.lt.s32.totalorder %v829, 210
    %vm846 = vmand %vm844, %vm845
    %s847 = scalar_lea.vmem [#allocation2], 2
    %848 = vst.msk [vmem:[%s847] ss:$2 sm:$0x3] %vm846, %v842
    %849 = vst [vmem:[#allocation1] sm:$0xff] %v814
    %850 = vst [vmem:[#allocation1 + $0x9] sm:$0xff] %v815
    %s851 = scalar_lea.vmem [#allocation1], 2
    %v852 = vld [vmem:[%s851] ss:$9 sm:$0xff]
    %853 = vrot.lane.b32.xlu0 %v852, 82
    %v854 = vpop.permute.xlu0 %853
    %v855 = vrot.slane %v854, 7
    %v856 = vsel %vm652, %v855, %v854
    %vm858 = vcmp.ge.s32.totalorder %v829, 82
    %vm859 = vcmp.lt.s32.totalorder %v829, 251
    %vm860 = vmand %vm858, %vm859
    %s861 = scalar_lea.vmem [#allocation2], 4
    %862 = vst.msk [vmem:[%s861] ss:$2 sm:$0x3] %vm860, %v856
    %863 = vst [vmem:[#allocation1] sm:$0xff] %v814
    %864 = vst [vmem:[#allocation1 + $0x9] sm:$0xff] %v815
    %s865 = scalar_lea.vmem [#allocation1], 3
    %v866 = vld [vmem:[%s865] ss:$9 sm:$0xff]
    %867 = vrot.lane.b32.xlu0 %v866, 123
    %v868 = vpop.permute.xlu0 %867
    %v869 = vrot.slane %v868, 7
    %vm870 = vcmask 1006592
    %v871 = vsel %vm870, %v869, %v868
    %vm873 = vcmp.ge.s32.totalorder %v829, 123
    %vm874 = vcmp.lt.s32.totalorder %v829, 292
    %vm875 = vmand %vm873, %vm874
    %s876 = scalar_lea.vmem [#allocation2], 6
    %877 = vst.msk [vmem:[%s876] ss:$2 sm:$0x7] %vm875, %v871
    %878 = vst [vmem:[#allocation1] sm:$0xff] %v814
    %879 = vst [vmem:[#allocation1 + $0x9] sm:$0xff] %v815
    %s880 = scalar_lea.vmem [#allocation1], 4
    %v881 = vld [vmem:[%s880] ss:$9 sm:$0xff]
    %882 = vrot.lane.b32.xlu0 %v881, 36
    %v883 = vpop.permute.xlu0 %882
    %v884 = vrot.slane %v883, 7
    %vm885 = vcmask 293888
    %v886 = vsel %vm885, %v884, %v883
    %vm888 = vcmp.ge.s32.totalorder %v829, 36
    %vm889 = vcmp.lt.s32.totalorder %v829, 205
    %vm890 = vmand %vm888, %vm889
    %s891 = scalar_lea.vmem [#allocation2], 10
    %892 = vst.msk [vmem:[%s891] ss:$2 sm:$0x3] %vm890, %v886
    %893 = vst [vmem:[#allocation1] sm:$0xff] %v814
    %894 = vst [vmem:[#allocation1 + $0x9] sm:$0xff] %v815
    %s895 = scalar_lea.vmem [#allocation1], 5
    %v896 = vld [vmem:[%s895] ss:$9 sm:$0xff]
    %897 = vrot.lane.b32.xlu0 %v896, 77
    %v898 = vpop.permute.xlu0 %897
    %v899 = vrot.slane %v898, 7
    %vm900 = vcmask 629760
    %v901 = vsel %vm900, %v899, %v898
    %vm903 = vcmp.ge.s32.totalorder %v829, 77
    %vm904 = vcmp.lt.s32.totalorder %v829, 246
    %vm905 = vmand %vm903, %vm904
    %s906 = scalar_lea.vmem [#allocation2], 12
    %907 = vst.msk [vmem:[%s906] ss:$2 sm:$0x3] %vm905, %v901
    %908 = vst [vmem:[#allocation1] sm:$0xff] %v814
    %909 = vst [vmem:[#allocation1 + $0x9] sm:$0xff] %v815
    %s910 = scalar_lea.vmem [#allocation1], 6
    %v911 = vld [vmem:[%s910] ss:$9 sm:$0xff]
    %912 = vrot.lane.b32.xlu0 %v911, 118
    %v913 = vpop.permute.xlu0 %912
    %v914 = vrot.slane %v913, 7
    %vm915 = vcmask 965632
    %v916 = vsel %vm915, %v914, %v913
    %vm918 = vcmp.ge.s32.totalorder %v829, 118
    %vm919 = vcmp.lt.s32.totalorder %v829, 287
    %vm920 = vmand %vm918, %vm919
    %s921 = scalar_lea.vmem [#allocation2], 14
    %922 = vst.msk [vmem:[%s921] ss:$2 sm:$0x7] %vm920, %v916
    %923 = vst [vmem:[#allocation1] sm:$0xff] %v814
    %924 = vst [vmem:[#allocation1 + $0x9] sm:$0xff] %v815
    %s925 = scalar_lea.vmem [#allocation1], 7
    %v926 = vld [vmem:[%s925] ss:$9 sm:$0xff]
    %927 = vrot.lane.b32.xlu0 %v926, 31
    %v928 = vpop.permute.xlu0 %927
    %v929 = vrot.slane %v928, 7
    %vm930 = vcmask 252928
    %v931 = vsel %vm930, %v929, %v928
    %vm933 = vcmp.ge.s32.totalorder %v829, 31
    %vm934 = vcmp.lt.s32.totalorder %v829, 200
    %vm935 = vmand %vm933, %vm934
    %s936 = scalar_lea.vmem [#allocation2], 18
    %937 = vst.msk [vmem:[%s936] ss:$2 sm:$0x3] %vm935, %v931
    %v940 = vrot.slane %v818, 7
    %v941 = vsel %vm826, %v817, %v940
    %942 = vrot.lane.b32.xlu0 %v941, 72
    %v943 = vpop.permute.xlu0 %942
    %v944 = vrot.slane %v943, 7
    %vm945 = vcmask 588800
    %v946 = vsel %vm945, %v944, %v943
    %vm948 = vcmp.ge.s32.totalorder %v829, 72
    %vm949 = vcmp.lt.s32.totalorder %v829, 241
    %vm950 = vmand %vm948, %vm949
    %s951 = scalar_lea.vmem [#allocation2], 20
    %952 = vst.msk [vmem:[%s951] ss:$2 sm:$0x3] %vm950, %v946
    %953 = vst [vmem:[#allocation1] sm:$0xff] %v817
    %954 = vst [vmem:[#allocation1 + $0x9] sm:$0xff] %v818
    %s955 = scalar_lea.vmem [#allocation1], 1
    %v956 = vld [vmem:[%s955] ss:$9 sm:$0xff]
    %957 = vrot.lane.b32.xlu0 %v956, 113
    %v958 = vpop.permute.xlu0 %957
    %v959 = vrot.slane %v958, 7
    %vm960 = vcmask 924672
    %v961 = vsel %vm960, %v959, %v958
    %vm963 = vcmp.ge.s32.totalorder %v829, 113
    %vm964 = vcmp.lt.s32.totalorder %v829, 282
    %vm965 = vmand %vm963, %vm964
    %s966 = scalar_lea.vmem [#allocation2], 22
    %967 = vst.msk [vmem:[%s966] ss:$2 sm:$0x7] %vm965, %v961
    %968 = vst [vmem:[#allocation1] sm:$0xff] %v817
    %969 = vst [vmem:[#allocation1 + $0x9] sm:$0xff] %v818
    %s970 = scalar_lea.vmem [#allocation1], 2
    %v971 = vld [vmem:[%s970] ss:$9 sm:$0xff]
    %972 = vrot.lane.b32.xlu0 %v971, 26
    %v973 = vpop.permute.xlu0 %972
    %v974 = vrot.slane %v973, 7
    %vm975 = vcmask 211968
    %v976 = vsel %vm975, %v974, %v973
    %vm978 = vcmp.ge.s32.totalorder %v829, 26
    %vm979 = vcmp.lt.s32.totalorder %v829, 195
    %vm980 = vmand %vm978, %vm979
    %s981 = scalar_lea.vmem [#allocation2], 26
    %982 = vst.msk [vmem:[%s981] ss:$2 sm:$0x3] %vm980, %v976
    %983 = vst [vmem:[#allocation1] sm:$0xff] %v817
    %984 = vst [vmem:[#allocation1 + $0x9] sm:$0xff] %v818
    %s985 = scalar_lea.vmem [#allocation1], 3
    %v986 = vld [vmem:[%s985] ss:$9 sm:$0xff]
    %987 = vrot.lane.b32.xlu0 %v986, 67
    %v988 = vpop.permute.xlu0 %987
    %v989 = vrot.slane %v988, 7
    %vm990 = vcmask 547840
    %v991 = vsel %vm990, %v989, %v988
    %vm993 = vcmp.ge.s32.totalorder %v829, 67
    %vm994 = vcmp.lt.s32.totalorder %v829, 236
    %vm995 = vmand %vm993, %vm994
    %s996 = scalar_lea.vmem [#allocation2], 28
    %997 = vst.msk [vmem:[%s996] ss:$2 sm:$0x3] %vm995, %v991
    %998 = vst [vmem:[#allocation1] sm:$0xff] %v817
    %999 = vst [vmem:[#allocation1 + $0x9] sm:$0xff] %v818
    %s1000 = scalar_lea.vmem [#allocation1], 4
    %v1001 = vld [vmem:[%s1000] ss:$9 sm:$0xff]
    %1002 = vrot.lane.b32.xlu0 %v1001, 108
    %v1003 = vpop.permute.xlu0 %1002
    %v1004 = vrot.slane %v1003, 7
    %vm1005 = vcmask 883712
    %v1006 = vsel %vm1005, %v1004, %v1003
    %vm1008 = vcmp.ge.s32.totalorder %v829, 108
    %vm1009 = vcmp.lt.s32.totalorder %v829, 277
    %vm1010 = vmand %vm1008, %vm1009
    %s1011 = scalar_lea.vmem [#allocation2], 30
    %1012 = vst.msk [vmem:[%s1011] ss:$2 sm:$0x7] %vm1010, %v1006
    %1013 = vst [vmem:[#allocation1] sm:$0xff] %v817
    %1014 = vst [vmem:[#allocation1 + $0x9] sm:$0xff] %v818
    %s1015 = scalar_lea.vmem [#allocation1], 5
    %v1016 = vld [vmem:[%s1015] ss:$9 sm:$0xff]
    %1017 = vrot.lane.b32.xlu0 %v1016, 21
    %v1018 = vpop.permute.xlu0 %1017
    %v1019 = vrot.slane %v1018, 7
    %vm1020 = vcmask 171008
    %v1021 = vsel %vm1020, %v1019, %v1018
    %vm1023 = vcmp.ge.s32.totalorder %v829, 21
    %vm1024 = vcmp.lt.s32.totalorder %v829, 190
    %vm1025 = vmand %vm1023, %vm1024
    %s1026 = scalar_lea.vmem [#allocation2], 34
    %1027 = vst.msk [vmem:[%s1026] ss:$2 sm:$0x3] %vm1025, %v1021
    %1028 = vst [vmem:[#allocation1] sm:$0xff] %v817
    %1029 = vst [vmem:[#allocation1 + $0x9] sm:$0xff] %v818
    %s1030 = scalar_lea.vmem [#allocation1], 6
    %v1031 = vld [vmem:[%s1030] ss:$9 sm:$0xff]
    %1032 = vrot.lane.b32.xlu0 %v1031, 62
    %v1033 = vpop.permute.xlu0 %1032
    %v1034 = vrot.slane %v1033, 7
    %vm1035 = vcmask 506880
    %v1036 = vsel %vm1035, %v1034, %v1033
    %vm1038 = vcmp.ge.s32.totalorder %v829, 62
    %vm1039 = vcmp.lt.s32.totalorder %v829, 231
    %vm1040 = vmand %vm1038, %vm1039
    %s1041 = scalar_lea.vmem [#allocation2], 36
    %1042 = vst.msk [vmem:[%s1041] ss:$2 sm:$0x3] %vm1040, %v1036
    %1043 = vst [vmem:[#allocation1] sm:$0xff] %v817
    %1044 = vst [vmem:[#allocation1 + $0x9] sm:$0xff] %v818
    %s1045 = scalar_lea.vmem [#allocation1], 7
    %v1046 = vld [vmem:[%s1045] ss:$9 sm:$0xff]
    %1047 = vrot.lane.b32.xlu0 %v1046, 103
    %v1048 = vpop.permute.xlu0 %1047
    %v1049 = vrot.slane %v1048, 7
    %vm1050 = vcmask 842752
    %v1051 = vsel %vm1050, %v1049, %v1048
    %vm1053 = vcmp.ge.s32.totalorder %v829, 103
    %vm1054 = vcmp.lt.s32.totalorder %v829, 272
    %vm1055 = vmand %vm1053, %vm1054
    %s1056 = scalar_lea.vmem [#allocation2], 38
    %1057 = vst.msk [vmem:[%s1056] ss:$2 sm:$0x7] %vm1055, %v1051
    %v1060 = vrot.slane %v821, 7
    %v1061 = vsel %vm826, %v820, %v1060
    %1062 = vrot.lane.b32.xlu0 %v1061, 16
    %v1063 = vpop.permute.xlu0 %1062
    %v1064 = vrot.slane %v1063, 7
    %vm1065 = vcmask 130048
    %v1066 = vsel %vm1065, %v1064, %v1063
    %vm1068 = vcmp.ge.s32.totalorder %v829, 16
    %vm1069 = vcmp.lt.s32.totalorder %v829, 185
    %vm1070 = vmand %vm1068, %vm1069
    %s1071 = scalar_lea.vmem [#allocation2], 42
    %1072 = vst.msk [vmem:[%s1071] ss:$2 sm:$0x3] %vm1070, %v1066
    %1073 = vst [vmem:[#allocation1] sm:$0xff] %v820
    %1074 = vst [vmem:[#allocation1 + $0x9] sm:$0xff] %v821
    %s1075 = scalar_lea.vmem [#allocation1], 1
    %v1076 = vld [vmem:[%s1075] ss:$9 sm:$0xff]
    %1077 = vrot.lane.b32.xlu0 %v1076, 57
    %v1078 = vpop.permute.xlu0 %1077
    %v1079 = vrot.slane %v1078, 7
    %vm1080 = vcmask 465920
    %v1081 = vsel %vm1080, %v1079, %v1078
    %vm1083 = vcmp.ge.s32.totalorder %v829, 57
    %vm1084 = vcmp.lt.s32.totalorder %v829, 226
    %vm1085 = vmand %vm1083, %vm1084
    %s1086 = scalar_lea.vmem [#allocation2], 44
    %1087 = vst.msk [vmem:[%s1086] ss:$2 sm:$0x3] %vm1085, %v1081
    %1088 = vst [vmem:[#allocation1] sm:$0xff] %v820
    %1089 = vst [vmem:[#allocation1 + $0x9] sm:$0xff] %v821
    %s1090 = scalar_lea.vmem [#allocation1], 2
    %v1091 = vld [vmem:[%s1090] ss:$9 sm:$0xff]
    %1092 = vrot.lane.b32.xlu0 %v1091, 98
    %v1093 = vpop.permute.xlu0 %1092
    %v1094 = vrot.slane %v1093, 7
    %vm1095 = vcmask 801792
    %v1096 = vsel %vm1095, %v1094, %v1093
    %vm1098 = vcmp.ge.s32.totalorder %v829, 98
    %vm1099 = vcmp.lt.s32.totalorder %v829, 267
    %vm1100 = vmand %vm1098, %vm1099
    %s1101 = scalar_lea.vmem [#allocation2], 46
    %1102 = vst.msk [vmem:[%s1101] ss:$2 sm:$0x7] %vm1100, %v1096
    %1103 = vst [vmem:[#allocation1] sm:$0xff] %v820
    %1104 = vst [vmem:[#allocation1 + $0x9] sm:$0xff] %v821
    %s1105 = scalar_lea.vmem [#allocation1], 3
    %v1106 = vld [vmem:[%s1105] ss:$9 sm:$0xff]
    %1107 = vrot.lane.b32.xlu0 %v1106, 11
    %v1108 = vpop.permute.xlu0 %1107
    %v1109 = vrot.slane %v1108, 7
    %vm1110 = vcmask 89088
    %v1111 = vsel %vm1110, %v1109, %v1108
    %vm1113 = vcmp.ge.s32.totalorder %v829, 11
    %vm1114 = vcmp.lt.s32.totalorder %v829, 180
    %vm1115 = vmand %vm1113, %vm1114
    %s1116 = scalar_lea.vmem [#allocation2], 50
    %1117 = vst.msk [vmem:[%s1116] ss:$2 sm:$0x3] %vm1115, %v1111
    %v1119 = vrot.slane %v816, 7
    %v1120 = vsel %vm826, %v815, %v1119
    %1121 = vrot.lane.b32.xlu0 %v1120, 87
    %v1122 = vpop.permute.xlu0 %1121
    %v1123 = vrot.slane %v1122, 1
    %vm1124 = vcmask 711680
    %v1125 = vsel %vm1124, %v1122, %v1123
    %s1127 = scalar_lea.vmem [#allocation2], 1
    %1128 = vst.msk [vmem:[%s1127] ss:$2 sm:$0x3] %vm832, %v1125
    %1129 = vst [vmem:[#allocation1] sm:$0xff] %v815
    %1130 = vst [vmem:[#allocation1 + $0x9] sm:$0xff] %v816
    %s1131 = scalar_lea.vmem [#allocation1], 1
    %v1132 = vld [vmem:[%s1131] ss:$9 sm:$0xff]
    %s1134 = scalar_lea.vmem [#allocation2], 3
    %1135 = vst.msk [vmem:[%s1134] ss:$2 sm:$0x3] %vm846, %v1132
    %1136 = vst [vmem:[#allocation1] sm:$0xff] %v815
    %1137 = vst [vmem:[#allocation1 + $0x9] sm:$0xff] %v816
    %s1138 = scalar_lea.vmem [#allocation1], 2
    %v1139 = vld [vmem:[%s1138] ss:$9 sm:$0xff]
    %1140 = vrot.lane.b32.xlu0 %v1139, 41
    %v1141 = vpop.permute.xlu0 %1140
    %v1142 = vrot.slane %v1141, 7
    %v1143 = vsel %vm841, %v1142, %v1141
    %s1145 = scalar_lea.vmem [#allocation2], 5
    %1146 = vst.msk [vmem:[%s1145] ss:$2 sm:$0x3] %vm860, %v1143
    %1147 = vst [vmem:[#allocation1] sm:$0xff] %v815
    %1148 = vst [vmem:[#allocation1 + $0x9] sm:$0xff] %v816
    %s1149 = scalar_lea.vmem [#allocation1], 3
    %v1150 = vld [vmem:[%s1149] ss:$9 sm:$0xff]
    %1151 = vrot.lane.b32.xlu0 %v1150, 82
    %v1152 = vpop.permute.xlu0 %1151
    %v1153 = vrot.slane %v1152, 7
    %v1154 = vsel %vm652, %v1153, %v1152
    %s1156 = scalar_lea.vmem [#allocation2], 7
    %1157 = vst.msk [vmem:[%s1156] ss:$2 sm:$0x7] %vm875, %v1154
    %1158 = vst [vmem:[#allocation1] sm:$0xff] %v815
    %1159 = vst [vmem:[#allocation1 + $0x9] sm:$0xff] %v816
    %s1160 = scalar_lea.vmem [#allocation1], 4
    %v1161 = vld [vmem:[%s1160] ss:$9 sm:$0xff]
    %1162 = vrot.lane.b32.xlu0 %v1161, 123
    %v1163 = vpop.permute.xlu0 %1162
    %v1164 = vrot.slane %v1163, 1
    %v1165 = vsel %vm870, %v1163, %v1164
    %s1167 = scalar_lea.vmem [#allocation2], 11
    %1168 = vst.msk [vmem:[%s1167] ss:$2 sm:$0x3] %vm890, %v1165
    %1169 = vst [vmem:[#allocation1] sm:$0xff] %v815
    %1170 = vst [vmem:[#allocation1 + $0x9] sm:$0xff] %v816
    %s1171 = scalar_lea.vmem [#allocation1], 5
    %v1172 = vld [vmem:[%s1171] ss:$9 sm:$0xff]
    %1173 = vrot.lane.b32.xlu0 %v1172, 36
    %v1174 = vpop.permute.xlu0 %1173
    %v1175 = vrot.slane %v1174, 7
    %v1176 = vsel %vm885, %v1175, %v1174
    %s1178 = scalar_lea.vmem [#allocation2], 13
    %1179 = vst.msk [vmem:[%s1178] ss:$2 sm:$0x3] %vm905, %v1176
    %1180 = vst [vmem:[#allocation1] sm:$0xff] %v815
    %1181 = vst [vmem:[#allocation1 + $0x9] sm:$0xff] %v816
    %s1182 = scalar_lea.vmem [#allocation1], 6
    %v1183 = vld [vmem:[%s1182] ss:$9 sm:$0xff]
    %1184 = vrot.lane.b32.xlu0 %v1183, 77
    %v1185 = vpop.permute.xlu0 %1184
    %v1186 = vrot.slane %v1185, 7
    %v1187 = vsel %vm900, %v1186, %v1185
    %s1189 = scalar_lea.vmem [#allocation2], 15
    %1190 = vst.msk [vmem:[%s1189] ss:$2 sm:$0x7] %vm920, %v1187
    %1191 = vst [vmem:[#allocation1] sm:$0xff] %v815
    %1192 = vst [vmem:[#allocation1 + $0x9] sm:$0xff] %v816
    %s1193 = scalar_lea.vmem [#allocation1], 7
    %v1194 = vld [vmem:[%s1193] ss:$9 sm:$0xff]
    %1195 = vrot.lane.b32.xlu0 %v1194, 118
    %v1196 = vpop.permute.xlu0 %1195
    %v1197 = vrot.slane %v1196, 1
    %v1198 = vsel %vm915, %v1196, %v1197
    %s1200 = scalar_lea.vmem [#allocation2], 19
    %1201 = vst.msk [vmem:[%s1200] ss:$2 sm:$0x3] %vm935, %v1198
    %v1203 = vrot.slane %v819, 7
    %v1204 = vsel %vm826, %v818, %v1203
    %1205 = vrot.lane.b32.xlu0 %v1204, 31
    %v1206 = vpop.permute.xlu0 %1205
    %v1207 = vrot.slane %v1206, 7
    %v1208 = vsel %vm930, %v1207, %v1206
    %s1210 = scalar_lea.vmem [#allocation2], 21
    %1211 = vst.msk [vmem:[%s1210] ss:$2 sm:$0x3] %vm950, %v1208
    %1212 = vst [vmem:[#allocation1] sm:$0xff] %v818
    %1213 = vst [vmem:[#allocation1 + $0x9] sm:$0xff] %v819
    %s1214 = scalar_lea.vmem [#allocation1], 1
    %v1215 = vld [vmem:[%s1214] ss:$9 sm:$0xff]
    %1216 = vrot.lane.b32.xlu0 %v1215, 72
    %v1217 = vpop.permute.xlu0 %1216
    %v1218 = vrot.slane %v1217, 7
    %v1219 = vsel %vm945, %v1218, %v1217
    %s1221 = scalar_lea.vmem [#allocation2], 23
    %1222 = vst.msk [vmem:[%s1221] ss:$2 sm:$0x7] %vm965, %v1219
    %1223 = vst [vmem:[#allocation1] sm:$0xff] %v818
    %1224 = vst [vmem:[#allocation1 + $0x9] sm:$0xff] %v819
    %s1225 = scalar_lea.vmem [#allocation1], 2
    %v1226 = vld [vmem:[%s1225] ss:$9 sm:$0xff]
    %1227 = vrot.lane.b32.xlu0 %v1226, 113
    %v1228 = vpop.permute.xlu0 %1227
    %v1229 = vrot.slane %v1228, 1
    %v1230 = vsel %vm960, %v1228, %v1229
    %s1232 = scalar_lea.vmem [#allocation2], 27
    %1233 = vst.msk [vmem:[%s1232] ss:$2 sm:$0x3] %vm980, %v1230
    %1234 = vst [vmem:[#allocation1] sm:$0xff] %v818
    %1235 = vst [vmem:[#allocation1 + $0x9] sm:$0xff] %v819
    %s1236 = scalar_lea.vmem [#allocation1], 3
    %v1237 = vld [vmem:[%s1236] ss:$9 sm:$0xff]
    %1238 = vrot.lane.b32.xlu0 %v1237, 26
    %v1239 = vpop.permute.xlu0 %1238
    %v1240 = vrot.slane %v1239, 7
    %v1241 = vsel %vm975, %v1240, %v1239
    %s1243 = scalar_lea.vmem [#allocation2], 29
    %1244 = vst.msk [vmem:[%s1243] ss:$2 sm:$0x3] %vm995, %v1241
    %1245 = vst [vmem:[#allocation1] sm:$0xff] %v818
    %1246 = vst [vmem:[#allocation1 + $0x9] sm:$0xff] %v819
    %s1247 = scalar_lea.vmem [#allocation1], 4
    %v1248 = vld [vmem:[%s1247] ss:$9 sm:$0xff]
    %1249 = vrot.lane.b32.xlu0 %v1248, 67
    %v1250 = vpop.permute.xlu0 %1249
    %v1251 = vrot.slane %v1250, 7
    %v1252 = vsel %vm990, %v1251, %v1250
    %s1254 = scalar_lea.vmem [#allocation2], 31
    %1255 = vst.msk [vmem:[%s1254] ss:$2 sm:$0x7] %vm1010, %v1252
    %1256 = vst [vmem:[#allocation1] sm:$0xff] %v818
    %1257 = vst [vmem:[#allocation1 + $0x9] sm:$0xff] %v819
    %s1258 = scalar_lea.vmem [#allocation1], 5
    %v1259 = vld [vmem:[%s1258] ss:$9 sm:$0xff]
    %1260 = vrot.lane.b32.xlu0 %v1259, 108
    %v1261 = vpop.permute.xlu0 %1260
    %v1262 = vrot.slane %v1261, 1
    %v1263 = vsel %vm1005, %v1261, %v1262
    %s1265 = scalar_lea.vmem [#allocation2], 35
    %1266 = vst.msk [vmem:[%s1265] ss:$2 sm:$0x3] %vm1025, %v1263
    %1267 = vst [vmem:[#allocation1] sm:$0xff] %v818
    %1268 = vst [vmem:[#allocation1 + $0x9] sm:$0xff] %v819
    %s1269 = scalar_lea.vmem [#allocation1], 6
    %v1270 = vld [vmem:[%s1269] ss:$9 sm:$0xff]
    %1271 = vrot.lane.b32.xlu0 %v1270, 21
    %v1272 = vpop.permute.xlu0 %1271
    %v1273 = vrot.slane %v1272, 7
    %v1274 = vsel %vm1020, %v1273, %v1272
    %s1276 = scalar_lea.vmem [#allocation2], 37
    %1277 = vst.msk [vmem:[%s1276] ss:$2 sm:$0x3] %vm1040, %v1274
    %1278 = vst [vmem:[#allocation1] sm:$0xff] %v818
    %1279 = vst [vmem:[#allocation1 + $0x9] sm:$0xff] %v819
    %s1280 = scalar_lea.vmem [#allocation1], 7
    %v1281 = vld [vmem:[%s1280] ss:$9 sm:$0xff]
    %1282 = vrot.lane.b32.xlu0 %v1281, 62
    %v1283 = vpop.permute.xlu0 %1282
    %v1284 = vrot.slane %v1283, 7
    %v1285 = vsel %vm1035, %v1284, %v1283
    %s1287 = scalar_lea.vmem [#allocation2], 39
    %1288 = vst.msk [vmem:[%s1287] ss:$2 sm:$0x7] %vm1055, %v1285
    %v1290 = vrot.slane %v822, 7
    %v1291 = vsel %vm826, %v821, %v1290
    %1292 = vrot.lane.b32.xlu0 %v1291, 103
    %v1293 = vpop.permute.xlu0 %1292
    %v1294 = vrot.slane %v1293, 1
    %v1295 = vsel %vm1050, %v1293, %v1294
    %s1297 = scalar_lea.vmem [#allocation2], 43
    %1298 = vst.msk [vmem:[%s1297] ss:$2 sm:$0x3] %vm1070, %v1295
    %1299 = vst [vmem:[#allocation1] sm:$0xff] %v821
    %1300 = vst [vmem:[#allocation1 + $0x9] sm:$0xff] %v822
    %s1301 = scalar_lea.vmem [#allocation1], 1
    %v1302 = vld [vmem:[%s1301] ss:$9 sm:$0xff]
    %1303 = vrot.lane.b32.xlu0 %v1302, 16
    %v1304 = vpop.permute.xlu0 %1303
    %v1305 = vrot.slane %v1304, 7
    %v1306 = vsel %vm1065, %v1305, %v1304
    %s1308 = scalar_lea.vmem [#allocation2], 45
    %1309 = vst.msk [vmem:[%s1308] ss:$2 sm:$0x3] %vm1085, %v1306
    %1310 = vst [vmem:[#allocation1] sm:$0xff] %v821
    %1311 = vst [vmem:[#allocation1 + $0x9] sm:$0xff] %v822
    %s1312 = scalar_lea.vmem [#allocation1], 2
    %v1313 = vld [vmem:[%s1312] ss:$9 sm:$0xff]
    %1314 = vrot.lane.b32.xlu0 %v1313, 57
    %v1315 = vpop.permute.xlu0 %1314
    %v1316 = vrot.slane %v1315, 7
    %v1317 = vsel %vm1080, %v1316, %v1315
    %s1319 = scalar_lea.vmem [#allocation2], 47
    %1320 = vst.msk [vmem:[%s1319] ss:$2 sm:$0x7] %vm1100, %v1317
    %1321 = vst [vmem:[#allocation1] sm:$0xff] %v821
    %1322 = vst [vmem:[#allocation1 + $0x9] sm:$0xff] %v822
    %s1323 = scalar_lea.vmem [#allocation1], 3
    %v1324 = vld [vmem:[%s1323] ss:$9 sm:$0xff]
    %1325 = vrot.lane.b32.xlu0 %v1324, 98
    %v1326 = vpop.permute.xlu0 %1325
    %v1327 = vrot.slane %v1326, 1
    %v1328 = vsel %vm1095, %v1326, %v1327
    %s1330 = scalar_lea.vmem [#allocation2], 51
    %1331 = vst.msk [vmem:[%s1330] ss:$2 sm:$0x3] %vm1115, %v1328
    %v1332 = vld [vmem:[#allocation2] sm:$0xff]
    %v1333 = vld [vmem:[#allocation2 + $0x8] sm:$0xff]
    %v1334 = vld [vmem:[#allocation2 + $0x10] sm:$0xff]
    %v1335 = vld [vmem:[#allocation2 + $0x18] sm:$0xff]
    %v1336 = vld [vmem:[#allocation2 + $0x20] sm:$0xff]
    %v1337 = vld [vmem:[#allocation2 + $0x28] sm:$0xff]
    %v1338 = vld [vmem:[#allocation2 + $0x30] sm:$0x3f]
    %v1339 = vld [vmem:[%s5] sm:$0xff]
    %v1340 = vld [vmem:[%s5 + $0x8] sm:$0xff]
    %v1341 = vld [vmem:[%s5 + $0x10] sm:$0xff]
    %v1342 = vld [vmem:[%s5 + $0x18] sm:$0xff]
    %v1343 = vld [vmem:[%s5 + $0x20] sm:$0xff]
    %v1344 = vld [vmem:[%s5 + $0x28] sm:$0xff]
    %v1345 = vld [vmem:[%s5 + $0x30] sm:$0xff]
    %v1346 = vld [vmem:[%s5 + $0x38] sm:$0xff]
    %v1347 = vld [vmem:[%s5 + $0x40] sm:$0xff]
    %v1348 = vld [vmem:[%s5 + $0x48] sm:$0xff]
    %v1349 = vld [vmem:[%s5 + $0x50] sm:$0xff]
    %v1350 = vld [vmem:[%s5 + $0x58] sm:$0xff]
    %v1351 = vld [vmem:[%s5 + $0x60] sm:$0xff]
    %v1352 = vld [vmem:[%s5 + $0x68] sm:$0xff]
    %v1353 = vld [vmem:[%s5 + $0x70] sm:$0xff]
    %v1354 = vld [vmem:[%s5 + $0x78] sm:$0xff]
    %v1355 = vld [vmem:[%s5 + $0x80] sm:$0xff]
    %v1356 = vld [vmem:[%s5 + $0x88] sm:$0xff]
    %v1357 = vld [vmem:[%s5 + $0x90] sm:$0xff]
    %v1358 = vld [vmem:[%s5 + $0x98] sm:$0xff]
    %v1359 = vld [vmem:[%s5 + $0xa0] sm:$0xff]
    %v1360 = vld [vmem:[%s5 + $0xa8] sm:$0xff]
    %v1361 = vld [vmem:[%s5 + $0xb0] sm:$0xff]
    %v1362 = vld [vmem:[%s5 + $0xb8] sm:$0xff]
    %v1363 = vld [vmem:[%s5 + $0xc0] sm:$0xff]
    %v1364 = vld [vmem:[%s5 + $0xc8] sm:$0xff]
    %v1365 = vld [vmem:[%s5 + $0xd0] sm:$0xff]
    %v1366 = vld [vmem:[%s5 + $0xd8] sm:$0x3]
    %v1367 = vld [vmem:[%s5 + $0xe0] sm:$0x3]
    %v1368 = vld [vmem:[%s5 + $0xe8] sm:$0x3]
    %v1369 = vld [vmem:[%s5 + $0xf0] sm:$0x3]
    %v1370 = vld [vmem:[%s5 + $0xf8] sm:$0x3]
    %v1371 = vld [vmem:[%s5 + $0x100] sm:$0x3]
    %v1372 = vld [vmem:[%s5 + $0x108] sm:$0x3]
    %v1373 = vld [vmem:[%s5 + $0x110] sm:$0x3]
    %v1374 = vld [vmem:[%s5 + $0x118] sm:$0x3]
    %v1375 = vld [vmem:[%s5 + $0x120] sm:$0x3]
    %v1376 = vld [vmem:[%s5 + $0x128] sm:$0x3]
    %v1377 = vld [vmem:[%s5 + $0x130] sm:$0x3]
    %v1378 = vld [vmem:[%s5 + $0x138] sm:$0x3]
    %v1379 = vld [vmem:[%s5 + $0x140] sm:$0x3]
    %v1380 = vld [vmem:[%s5 + $0x148] sm:$0x3]
    %v1381 = vld [vmem:[%s5 + $0x150] sm:$0x3]
    %v1382 = vld [vmem:[%s5 + $0x158] sm:$0x3]
    %v1383 = vld [vmem:[%s5 + $0x160] sm:$0x3]
    %v1384 = vld [vmem:[%s5 + $0x168] sm:$0x3]
    %v1385 = vld [vmem:[%s5 + $0x170] sm:$0x3]
    %v1386 = vld [vmem:[%s5 + $0x178] sm:$0x3]
    %v1387 = vld [vmem:[%s5 + $0x180] sm:$0x3]
    %v1388 = vld [vmem:[%s5 + $0x188] sm:$0x3]
    %v1389 = vld [vmem:[%s5 + $0x190] sm:$0x3]
    %v1390 = vld [vmem:[%s5 + $0x198] sm:$0x3]
    %v1391 = vld [vmem:[%s5 + $0x1a0] sm:$0x3]
    %v1392 = vld [vmem:[%s5 + $0x1a8] sm:$0x3]
    %v1393 = vld [vmem:[%s6] sm:$0x1]
    %v1395 = vperm.slane %v1393, 0
    %1404 = vst [vmem:[#allocation1] ss:$4 sm:$0xff] %v1332
    %s1405 = scalar_lea.vmem [#allocation1], 32
    %1406 = vst [vmem:[%s1405] ss:$4 sm:$0xff] %v1333
    %v1407 = vld.sshfl [vmem:[#allocation1] sm:$0xff pattern:$0x73625140]
    %v1408 = vld.sshfl [vmem:[#allocation1 + $0x8] sm:$0xff pattern:$0x73625140]
    %v1409 = vld.sshfl [vmem:[#allocation1 + $0x10] sm:$0xff pattern:$0x73625140]
    %v1410 = vld.sshfl [vmem:[#allocation1 + $0x18] sm:$0xff pattern:$0x73625140]
    %v1411 = vld.sshfl [vmem:[#allocation1 + $0x20] sm:$0xff pattern:$0x73625140]
    %v1412 = vld.sshfl [vmem:[#allocation1 + $0x28] sm:$0xff pattern:$0x73625140]
    %v1413 = vld.sshfl [vmem:[#allocation1 + $0x30] sm:$0xff pattern:$0x73625140]
    %v1414 = vld.sshfl [vmem:[#allocation1 + $0x38] sm:$0xff pattern:$0x73625140]
    %1415 = vst [vmem:[#allocation1] ss:$4 sm:$0xff] %v1334
    %1416 = vst [vmem:[%s1405] ss:$4 sm:$0xff] %v1335
    %v1417 = vld.sshfl [vmem:[#allocation1] sm:$0xff pattern:$0x73625140]
    %v1418 = vld.sshfl [vmem:[#allocation1 + $0x8] sm:$0xff pattern:$0x73625140]
    %v1419 = vld.sshfl [vmem:[#allocation1 + $0x10] sm:$0xff pattern:$0x73625140]
    %v1420 = vld.sshfl [vmem:[#allocation1 + $0x18] sm:$0xff pattern:$0x73625140]
    %v1421 = vld.sshfl [vmem:[#allocation1 + $0x20] sm:$0xff pattern:$0x73625140]
    %v1422 = vld.sshfl [vmem:[#allocation1 + $0x28] sm:$0xff pattern:$0x73625140]
    %v1423 = vld.sshfl [vmem:[#allocation1 + $0x30] sm:$0xff pattern:$0x73625140]
    %v1424 = vld.sshfl [vmem:[#allocation1 + $0x38] sm:$0xff pattern:$0x73625140]
    %1425 = vst [vmem:[#allocation1] ss:$4 sm:$0xff] %v1336
    %1426 = vst [vmem:[%s1405] ss:$4 sm:$0xff] %v1337
    %v1427 = vld.sshfl [vmem:[#allocation1] sm:$0xff pattern:$0x73625140]
    %v1428 = vld.sshfl [vmem:[#allocation1 + $0x8] sm:$0xff pattern:$0x73625140]
    %v1429 = vld.sshfl [vmem:[#allocation1 + $0x10] sm:$0xff pattern:$0x73625140]
    %v1430 = vld.sshfl [vmem:[#allocation1 + $0x18] sm:$0xff pattern:$0x73625140]
    %v1431 = vld.sshfl [vmem:[#allocation1 + $0x20] sm:$0xff pattern:$0x73625140]
    %v1432 = vld.sshfl [vmem:[#allocation1 + $0x28] sm:$0xff pattern:$0x73625140]
    %v1433 = vld.sshfl [vmem:[#allocation1 + $0x30] sm:$0xff pattern:$0x73625140]
    %v1434 = vld.sshfl [vmem:[#allocation1 + $0x38] sm:$0xff pattern:$0x73625140]
    %1435 = vst [vmem:[#allocation1] ss:$4 sm:$0xff] %v1338
    %v1436 = vld.sshfl [vmem:[#allocation1] sm:$0xff pattern:$0x73625140]
    %v1437 = vld.sshfl [vmem:[#allocation1 + $0x8] sm:$0xff pattern:$0x73625140]
    %v1438 = vld.sshfl [vmem:[#allocation1 + $0x10] sm:$0xff pattern:$0x73625140]
    %vm1465 = vcmask 424960
    %v1466 = vsel %vm1465, %v1438, 0
    %v1469 = vsel %vm1465, %v1365, 0
    %v1472 = vsel %vm1465, %v1392, 0
    %1474 = vmatpush.xpose.msra.mxu0 0.0
    %1475 = vmatpush.xpose.msra.mxu0 0.0
    %1476 = vmatpush.xpose.msra.mxu0 0.0
    %1477 = vmatpush.xpose.msra.mxu0 0.0
    %1478 = vmatpush.xpose.msra.mxu0 0.0
    %1479 = vmatpush.xpose.msra.mxu0 0.0
    %1480 = vmatpush.xpose.msra.mxu0 0.0
    %1481 = vmatpush.xpose.msra.mxu0 0.0
    %1482 = vmatpush.xpose.msra.mxu0 0.0
    %1483 = vmatpush.xpose.msra.mxu0 0.0
    %1484 = vmatpush.xpose.msra.mxu0 0.0
    %1485 = vmatpush.xpose.msra.mxu0 0.0
    %1486 = vmatpush.xpose.msra.mxu0 0.0
    %1487 = vmatpush.xpose.msra.mxu0 0.0
    %1488 = vmatpush.xpose.msra.mxu0 %v1366
    %1489 = vmatpush.xpose.msra.mxu0 %v1339
    %1490 = vmatmul.f32.gmra.mxu0 %v1407
    %v1491 = vpop.f32.mrf.mxu0
    %v1492 = vadd.f32 %v1395, %v1491
    %1493 = vdwg.mxu0
    %1494 = vmatpush.xpose.msra.mxu0 0.0
    %1495 = vmatpush.xpose.msra.mxu0 0.0
    %1496 = vmatpush.xpose.msra.mxu0 0.0
    %1497 = vmatpush.xpose.msra.mxu0 0.0
    %1498 = vmatpush.xpose.msra.mxu0 0.0
    %1499 = vmatpush.xpose.msra.mxu0 0.0
    %1500 = vmatpush.xpose.msra.mxu0 0.0
    %1501 = vmatpush.xpose.msra.mxu0 0.0
    %1502 = vmatpush.xpose.msra.mxu0 0.0
    %1503 = vmatpush.xpose.msra.mxu0 0.0
    %1504 = vmatpush.xpose.msra.mxu0 0.0
    %1505 = vmatpush.xpose.msra.mxu0 0.0
    %1506 = vmatpush.xpose.msra.mxu0 0.0
    %1507 = vmatpush.xpose.msra.mxu0 0.0
    %1508 = vmatpush.xpose.msra.mxu0 %v1367
    %1509 = vmatpush.xpose.msra.mxu0 %v1340
    %1510 = vmatmul.f32.gmra.mxu0 %v1408
    %v1511 = vpop.f32.mrf.mxu0
    %v1512 = vadd.f32 %v1492, %v1511
    %1513 = vdwg.mxu0
    %1514 = vmatpush.xpose.msra.mxu0 0.0
    %1515 = vmatpush.xpose.msra.mxu0 0.0
    %1516 = vmatpush.xpose.msra.mxu0 0.0
    %1517 = vmatpush.xpose.msra.mxu0 0.0
    %1518 = vmatpush.xpose.msra.mxu0 0.0
    %1519 = vmatpush.xpose.msra.mxu0 0.0
    %1520 = vmatpush.xpose.msra.mxu0 0.0
    %1521 = vmatpush.xpose.msra.mxu0 0.0
    %1522 = vmatpush.xpose.msra.mxu0 0.0
    %1523 = vmatpush.xpose.msra.mxu0 0.0
    %1524 = vmatpush.xpose.msra.mxu0 0.0
    %1525 = vmatpush.xpose.msra.mxu0 0.0
    %1526 = vmatpush.xpose.msra.mxu0 0.0
    %1527 = vmatpush.xpose.msra.mxu0 0.0
    %1528 = vmatpush.xpose.msra.mxu0 %v1368
    %1529 = vmatpush.xpose.msra.mxu0 %v1341
    %1530 = vmatmul.f32.gmra.mxu0 %v1409
    %v1531 = vpop.f32.mrf.mxu0
    %v1532 = vadd.f32 %v1512, %v1531
    %1533 = vdwg.mxu0
    %1534 = vmatpush.xpose.msra.mxu0 0.0
    %1535 = vmatpush.xpose.msra.mxu0 0.0
    %1536 = vmatpush.xpose.msra.mxu0 0.0
    %1537 = vmatpush.xpose.msra.mxu0 0.0
    %1538 = vmatpush.xpose.msra.mxu0 0.0
    %1539 = vmatpush.xpose.msra.mxu0 0.0
    %1540 = vmatpush.xpose.msra.mxu0 0.0
    %1541 = vmatpush.xpose.msra.mxu0 0.0
    %1542 = vmatpush.xpose.msra.mxu0 0.0
    %1543 = vmatpush.xpose.msra.mxu0 0.0
    %1544 = vmatpush.xpose.msra.mxu0 0.0
    %1545 = vmatpush.xpose.msra.mxu0 0.0
    %1546 = vmatpush.xpose.msra.mxu0 0.0
    %1547 = vmatpush.xpose.msra.mxu0 0.0
    %1548 = vmatpush.xpose.msra.mxu0 %v1369
    %1549 = vmatpush.xpose.msra.mxu0 %v1342
    %1550 = vmatmul.f32.gmra.mxu0 %v1410
    %v1551 = vpop.f32.mrf.mxu0
    %v1552 = vadd.f32 %v1532, %v1551
    %1553 = vdwg.mxu0
    %1554 = vmatpush.xpose.msra.mxu0 0.0
    %1555 = vmatpush.xpose.msra.mxu0 0.0
    %1556 = vmatpush.xpose.msra.mxu0 0.0
    %1557 = vmatpush.xpose.msra.mxu0 0.0
    %1558 = vmatpush.xpose.msra.mxu0 0.0
    %1559 = vmatpush.xpose.msra.mxu0 0.0
    %1560 = vmatpush.xpose.msra.mxu0 0.0
    %1561 = vmatpush.xpose.msra.mxu0 0.0
    %1562 = vmatpush.xpose.msra.mxu0 0.0
    %1563 = vmatpush.xpose.msra.mxu0 0.0
    %1564 = vmatpush.xpose.msra.mxu0 0.0
    %1565 = vmatpush.xpose.msra.mxu0 0.0
    %1566 = vmatpush.xpose.msra.mxu0 0.0
    %1567 = vmatpush.xpose.msra.mxu0 0.0
    %1568 = vmatpush.xpose.msra.mxu0 %v1370
    %1569 = vmatpush.xpose.msra.mxu0 %v1343
    %1570 = vmatmul.f32.gmra.mxu0 %v1411
    %v1571 = vpop.f32.mrf.mxu0
    %v1572 = vadd.f32 %v1552, %v1571
    %1573 = vdwg.mxu0
    %1574 = vmatpush.xpose.msra.mxu0 0.0
    %1575 = vmatpush.xpose.msra.mxu0 0.0
    %1576 = vmatpush.xpose.msra.mxu0 0.0
    %1577 = vmatpush.xpose.msra.mxu0 0.0
    %1578 = vmatpush.xpose.msra.mxu0 0.0
    %1579 = vmatpush.xpose.msra.mxu0 0.0
    %1580 = vmatpush.xpose.msra.mxu0 0.0
    %1581 = vmatpush.xpose.msra.mxu0 0.0
    %1582 = vmatpush.xpose.msra.mxu0 0.0
    %1583 = vmatpush.xpose.msra.mxu0 0.0
    %1584 = vmatpush.xpose.msra.mxu0 0.0
    %1585 = vmatpush.xpose.msra.mxu0 0.0
    %1586 = vmatpush.xpose.msra.mxu0 0.0
    %1587 = vmatpush.xpose.msra.mxu0 0.0
    %1588 = vmatpush.xpose.msra.mxu0 %v1371
    %1589 = vmatpush.xpose.msra.mxu0 %v1344
    %1590 = vmatmul.f32.gmra.mxu0 %v1412
    %v1591 = vpop.f32.mrf.mxu0
    %v1592 = vadd.f32 %v1572, %v1591
    %1593 = vdwg.mxu0
    %1594 = vmatpush.xpose.msra.mxu0 0.0
    %1595 = vmatpush.xpose.msra.mxu0 0.0
    %1596 = vmatpush.xpose.msra.mxu0 0.0
    %1597 = vmatpush.xpose.msra.mxu0 0.0
    %1598 = vmatpush.xpose.msra.mxu0 0.0
    %1599 = vmatpush.xpose.msra.mxu0 0.0
    %1600 = vmatpush.xpose.msra.mxu0 0.0
    %1601 = vmatpush.xpose.msra.mxu0 0.0
    %1602 = vmatpush.xpose.msra.mxu0 0.0
    %1603 = vmatpush.xpose.msra.mxu0 0.0
    %1604 = vmatpush.xpose.msra.mxu0 0.0
    %1605 = vmatpush.xpose.msra.mxu0 0.0
    %1606 = vmatpush.xpose.msra.mxu0 0.0
    %1607 = vmatpush.xpose.msra.mxu0 0.0
    %1608 = vmatpush.xpose.msra.mxu0 %v1372
    %1609 = vmatpush.xpose.msra.mxu0 %v1345
    %1610 = vmatmul.f32.gmra.mxu0 %v1413
    %v1611 = vpop.f32.mrf.mxu0
    %v1612 = vadd.f32 %v1592, %v1611
    %1613 = vdwg.mxu0
    %1614 = vmatpush.xpose.msra.mxu0 0.0
    %1615 = vmatpush.xpose.msra.mxu0 0.0
    %1616 = vmatpush.xpose.msra.mxu0 0.0
    %1617 = vmatpush.xpose.msra.mxu0 0.0
    %1618 = vmatpush.xpose.msra.mxu0 0.0
    %1619 = vmatpush.xpose.msra.mxu0 0.0
    %1620 = vmatpush.xpose.msra.mxu0 0.0
    %1621 = vmatpush.xpose.msra.mxu0 0.0
    %1622 = vmatpush.xpose.msra.mxu0 0.0
    %1623 = vmatpush.xpose.msra.mxu0 0.0
    %1624 = vmatpush.xpose.msra.mxu0 0.0
    %1625 = vmatpush.xpose.msra.mxu0 0.0
    %1626 = vmatpush.xpose.msra.mxu0 0.0
    %1627 = vmatpush.xpose.msra.mxu0 0.0
    %1628 = vmatpush.xpose.msra.mxu0 %v1373
    %1629 = vmatpush.xpose.msra.mxu0 %v1346
    %1630 = vmatmul.f32.gmra.mxu0 %v1414
    %v1631 = vpop.f32.mrf.mxu0
    %v1632 = vadd.f32 %v1612, %v1631
    %1633 = vdwg.mxu0
    %1634 = vmatpush.xpose.msra.mxu0 0.0
    %1635 = vmatpush.xpose.msra.mxu0 0.0
    %1636 = vmatpush.xpose.msra.mxu0 0.0
    %1637 = vmatpush.xpose.msra.mxu0 0.0
    %1638 = vmatpush.xpose.msra.mxu0 0.0
    %1639 = vmatpush.xpose.msra.mxu0 0.0
    %1640 = vmatpush.xpose.msra.mxu0 0.0
    %1641 = vmatpush.xpose.msra.mxu0 0.0
    %1642 = vmatpush.xpose.msra.mxu0 0.0
    %1643 = vmatpush.xpose.msra.mxu0 0.0
    %1644 = vmatpush.xpose.msra.mxu0 0.0
    %1645 = vmatpush.xpose.msra.mxu0 0.0
    %1646 = vmatpush.xpose.msra.mxu0 0.0
    %1647 = vmatpush.xpose.msra.mxu0 0.0
    %1648 = vmatpush.xpose.msra.mxu0 %v1374
    %1649 = vmatpush.xpose.msra.mxu0 %v1347
    %1650 = vmatmul.f32.gmra.mxu0 %v1417
    %v1651 = vpop.f32.mrf.mxu0
    %v1652 = vadd.f32 %v1632, %v1651
    %1653 = vdwg.mxu0
    %1654 = vmatpush.xpose.msra.mxu0 0.0
    %1655 = vmatpush.xpose.msra.mxu0 0.0
    %1656 = vmatpush.xpose.msra.mxu0 0.0
    %1657 = vmatpush.xpose.msra.mxu0 0.0
    %1658 = vmatpush.xpose.msra.mxu0 0.0
    %1659 = vmatpush.xpose.msra.mxu0 0.0
    %1660 = vmatpush.xpose.msra.mxu0 0.0
    %1661 = vmatpush.xpose.msra.mxu0 0.0
    %1662 = vmatpush.xpose.msra.mxu0 0.0
    %1663 = vmatpush.xpose.msra.mxu0 0.0
    %1664 = vmatpush.xpose.msra.mxu0 0.0
    %1665 = vmatpush.xpose.msra.mxu0 0.0
    %1666 = vmatpush.xpose.msra.mxu0 0.0
    %1667 = vmatpush.xpose.msra.mxu0 0.0
    %1668 = vmatpush.xpose.msra.mxu0 %v1375
    %1669 = vmatpush.xpose.msra.mxu0 %v1348
    %1670 = vmatmul.f32.gmra.mxu0 %v1418
    %v1671 = vpop.f32.mrf.mxu0
    %v1672 = vadd.f32 %v1652, %v1671
    %1673 = vdwg.mxu0
    %1674 = vmatpush.xpose.msra.mxu0 0.0
    %1675 = vmatpush.xpose.msra.mxu0 0.0
    %1676 = vmatpush.xpose.msra.mxu0 0.0
    %1677 = vmatpush.xpose.msra.mxu0 0.0
    %1678 = vmatpush.xpose.msra.mxu0 0.0
    %1679 = vmatpush.xpose.msra.mxu0 0.0
    %1680 = vmatpush.xpose.msra.mxu0 0.0
    %1681 = vmatpush.xpose.msra.mxu0 0.0
    %1682 = vmatpush.xpose.msra.mxu0 0.0
    %1683 = vmatpush.xpose.msra.mxu0 0.0
    %1684 = vmatpush.xpose.msra.mxu0 0.0
    %1685 = vmatpush.xpose.msra.mxu0 0.0
    %1686 = vmatpush.xpose.msra.mxu0 0.0
    %1687 = vmatpush.xpose.msra.mxu0 0.0
    %1688 = vmatpush.xpose.msra.mxu0 %v1376
    %1689 = vmatpush.xpose.msra.mxu0 %v1349
    %1690 = vmatmul.f32.gmra.mxu0 %v1419
    %v1691 = vpop.f32.mrf.mxu0
    %v1692 = vadd.f32 %v1672, %v1691
    %1693 = vdwg.mxu0
    %1694 = vmatpush.xpose.msra.mxu0 0.0
    %1695 = vmatpush.xpose.msra.mxu0 0.0
    %1696 = vmatpush.xpose.msra.mxu0 0.0
    %1697 = vmatpush.xpose.msra.mxu0 0.0
    %1698 = vmatpush.xpose.msra.mxu0 0.0
    %1699 = vmatpush.xpose.msra.mxu0 0.0
    %1700 = vmatpush.xpose.msra.mxu0 0.0
    %1701 = vmatpush.xpose.msra.mxu0 0.0
    %1702 = vmatpush.xpose.msra.mxu0 0.0
    %1703 = vmatpush.xpose.msra.mxu0 0.0
    %1704 = vmatpush.xpose.msra.mxu0 0.0
    %1705 = vmatpush.xpose.msra.mxu0 0.0
    %1706 = vmatpush.xpose.msra.mxu0 0.0
    %1707 = vmatpush.xpose.msra.mxu0 0.0
    %1708 = vmatpush.xpose.msra.mxu0 %v1377
    %1709 = vmatpush.xpose.msra.mxu0 %v1350
    %1710 = vmatmul.f32.gmra.mxu0 %v1420
    %v1711 = vpop.f32.mrf.mxu0
    %v1712 = vadd.f32 %v1692, %v1711
    %1713 = vdwg.mxu0
    %1714 = vmatpush.xpose.msra.mxu0 0.0
    %1715 = vmatpush.xpose.msra.mxu0 0.0
    %1716 = vmatpush.xpose.msra.mxu0 0.0
    %1717 = vmatpush.xpose.msra.mxu0 0.0
    %1718 = vmatpush.xpose.msra.mxu0 0.0
    %1719 = vmatpush.xpose.msra.mxu0 0.0
    %1720 = vmatpush.xpose.msra.mxu0 0.0
    %1721 = vmatpush.xpose.msra.mxu0 0.0
    %1722 = vmatpush.xpose.msra.mxu0 0.0
    %1723 = vmatpush.xpose.msra.mxu0 0.0
    %1724 = vmatpush.xpose.msra.mxu0 0.0
    %1725 = vmatpush.xpose.msra.mxu0 0.0
    %1726 = vmatpush.xpose.msra.mxu0 0.0
    %1727 = vmatpush.xpose.msra.mxu0 0.0
    %1728 = vmatpush.xpose.msra.mxu0 %v1378
    %1729 = vmatpush.xpose.msra.mxu0 %v1351
    %1730 = vmatmul.f32.gmra.mxu0 %v1421
    %v1731 = vpop.f32.mrf.mxu0
    %v1732 = vadd.f32 %v1712, %v1731
    %1733 = vdwg.mxu0
    %1734 = vmatpush.xpose.msra.mxu0 0.0
    %1735 = vmatpush.xpose.msra.mxu0 0.0
    %1736 = vmatpush.xpose.msra.mxu0 0.0
    %1737 = vmatpush.xpose.msra.mxu0 0.0
    %1738 = vmatpush.xpose.msra.mxu0 0.0
    %1739 = vmatpush.xpose.msra.mxu0 0.0
    %1740 = vmatpush.xpose.msra.mxu0 0.0
    %1741 = vmatpush.xpose.msra.mxu0 0.0
    %1742 = vmatpush.xpose.msra.mxu0 0.0
    %1743 = vmatpush.xpose.msra.mxu0 0.0
    %1744 = vmatpush.xpose.msra.mxu0 0.0
    %1745 = vmatpush.xpose.msra.mxu0 0.0
    %1746 = vmatpush.xpose.msra.mxu0 0.0
    %1747 = vmatpush.xpose.msra.mxu0 0.0
    %1748 = vmatpush.xpose.msra.mxu0 %v1379
    %1749 = vmatpush.xpose.msra.mxu0 %v1352
    %1750 = vmatmul.f32.gmra.mxu0 %v1422
    %v1751 = vpop.f32.mrf.mxu0
    %v1752 = vadd.f32 %v1732, %v1751
    %1753 = vdwg.mxu0
    %1754 = vmatpush.xpose.msra.mxu0 0.0
    %1755 = vmatpush.xpose.msra.mxu0 0.0
    %1756 = vmatpush.xpose.msra.mxu0 0.0
    %1757 = vmatpush.xpose.msra.mxu0 0.0
    %1758 = vmatpush.xpose.msra.mxu0 0.0
    %1759 = vmatpush.xpose.msra.mxu0 0.0
    %1760 = vmatpush.xpose.msra.mxu0 0.0
    %1761 = vmatpush.xpose.msra.mxu0 0.0
    %1762 = vmatpush.xpose.msra.mxu0 0.0
    %1763 = vmatpush.xpose.msra.mxu0 0.0
    %1764 = vmatpush.xpose.msra.mxu0 0.0
    %1765 = vmatpush.xpose.msra.mxu0 0.0
    %1766 = vmatpush.xpose.msra.mxu0 0.0
    %1767 = vmatpush.xpose.msra.mxu0 0.0
    %1768 = vmatpush.xpose.msra.mxu0 %v1380
    %1769 = vmatpush.xpose.msra.mxu0 %v1353
    %1770 = vmatmul.f32.gmra.mxu0 %v1423
    %v1771 = vpop.f32.mrf.mxu0
    %v1772 = vadd.f32 %v1752, %v1771
    %1773 = vdwg.mxu0
    %1774 = vmatpush.xpose.msra.mxu0 0.0
    %1775 = vmatpush.xpose.msra.mxu0 0.0
    %1776 = vmatpush.xpose.msra.mxu0 0.0
    %1777 = vmatpush.xpose.msra.mxu0 0.0
    %1778 = vmatpush.xpose.msra.mxu0 0.0
    %1779 = vmatpush.xpose.msra.mxu0 0.0
    %1780 = vmatpush.xpose.msra.mxu0 0.0
    %1781 = vmatpush.xpose.msra.mxu0 0.0
    %1782 = vmatpush.xpose.msra.mxu0 0.0
    %1783 = vmatpush.xpose.msra.mxu0 0.0
    %1784 = vmatpush.xpose.msra.mxu0 0.0
    %1785 = vmatpush.xpose.msra.mxu0 0.0
    %1786 = vmatpush.xpose.msra.mxu0 0.0
    %1787 = vmatpush.xpose.msra.mxu0 0.0
    %1788 = vmatpush.xpose.msra.mxu0 %v1381
    %1789 = vmatpush.xpose.msra.mxu0 %v1354
    %1790 = vmatmul.f32.gmra.mxu0 %v1424
    %v1791 = vpop.f32.mrf.mxu0
    %v1792 = vadd.f32 %v1772, %v1791
    %1793 = vdwg.mxu0
    %1794 = vmatpush.xpose.msra.mxu0 0.0
    %1795 = vmatpush.xpose.msra.mxu0 0.0
    %1796 = vmatpush.xpose.msra.mxu0 0.0
    %1797 = vmatpush.xpose.msra.mxu0 0.0
    %1798 = vmatpush.xpose.msra.mxu0 0.0
    %1799 = vmatpush.xpose.msra.mxu0 0.0
    %1800 = vmatpush.xpose.msra.mxu0 0.0
    %1801 = vmatpush.xpose.msra.mxu0 0.0
    %1802 = vmatpush.xpose.msra.mxu0 0.0
    %1803 = vmatpush.xpose.msra.mxu0 0.0
    %1804 = vmatpush.xpose.msra.mxu0 0.0
    %1805 = vmatpush.xpose.msra.mxu0 0.0
    %1806 = vmatpush.xpose.msra.mxu0 0.0
    %1807 = vmatpush.xpose.msra.mxu0 0.0
    %1808 = vmatpush.xpose.msra.mxu0 %v1382
    %1809 = vmatpush.xpose.msra.mxu0 %v1355
    %1810 = vmatmul.f32.gmra.mxu0 %v1427
    %v1811 = vpop.f32.mrf.mxu0
    %v1812 = vadd.f32 %v1792, %v1811
    %1813 = vdwg.mxu0
    %1814 = vmatpush.xpose.msra.mxu0 0.0
    %1815 = vmatpush.xpose.msra.mxu0 0.0
    %1816 = vmatpush.xpose.msra.mxu0 0.0
    %1817 = vmatpush.xpose.msra.mxu0 0.0
    %1818 = vmatpush.xpose.msra.mxu0 0.0
    %1819 = vmatpush.xpose.msra.mxu0 0.0
    %1820 = vmatpush.xpose.msra.mxu0 0.0
    %1821 = vmatpush.xpose.msra.mxu0 0.0
    %1822 = vmatpush.xpose.msra.mxu0 0.0
    %1823 = vmatpush.xpose.msra.mxu0 0.0
    %1824 = vmatpush.xpose.msra.mxu0 0.0
    %1825 = vmatpush.xpose.msra.mxu0 0.0
    %1826 = vmatpush.xpose.msra.mxu0 0.0
    %1827 = vmatpush.xpose.msra.mxu0 0.0
    %1828 = vmatpush.xpose.msra.mxu0 %v1383
    %1829 = vmatpush.xpose.msra.mxu0 %v1356
    %1830 = vmatmul.f32.gmra.mxu0 %v1428
    %v1831 = vpop.f32.mrf.mxu0
    %v1832 = vadd.f32 %v1812, %v1831
    %1833 = vdwg.mxu0
    %1834 = vmatpush.xpose.msra.mxu0 0.0
    %1835 = vmatpush.xpose.msra.mxu0 0.0
    %1836 = vmatpush.xpose.msra.mxu0 0.0
    %1837 = vmatpush.xpose.msra.mxu0 0.0
    %1838 = vmatpush.xpose.msra.mxu0 0.0
    %1839 = vmatpush.xpose.msra.mxu0 0.0
    %1840 = vmatpush.xpose.msra.mxu0 0.0
    %1841 = vmatpush.xpose.msra.mxu0 0.0
    %1842 = vmatpush.xpose.msra.mxu0 0.0
    %1843 = vmatpush.xpose.msra.mxu0 0.0
    %1844 = vmatpush.xpose.msra.mxu0 0.0
    %1845 = vmatpush.xpose.msra.mxu0 0.0
    %1846 = vmatpush.xpose.msra.mxu0 0.0
    %1847 = vmatpush.xpose.msra.mxu0 0.0
    %1848 = vmatpush.xpose.msra.mxu0 %v1384
    %1849 = vmatpush.xpose.msra.mxu0 %v1357
    %1850 = vmatmul.f32.gmra.mxu0 %v1429
    %v1851 = vpop.f32.mrf.mxu0
    %v1852 = vadd.f32 %v1832, %v1851
    %1853 = vdwg.mxu0
    %1854 = vmatpush.xpose.msra.mxu0 0.0
    %1855 = vmatpush.xpose.msra.mxu0 0.0
    %1856 = vmatpush.xpose.msra.mxu0 0.0
    %1857 = vmatpush.xpose.msra.mxu0 0.0
    %1858 = vmatpush.xpose.msra.mxu0 0.0
    %1859 = vmatpush.xpose.msra.mxu0 0.0
    %1860 = vmatpush.xpose.msra.mxu0 0.0
    %1861 = vmatpush.xpose.msra.mxu0 0.0
    %1862 = vmatpush.xpose.msra.mxu0 0.0
    %1863 = vmatpush.xpose.msra.mxu0 0.0
    %1864 = vmatpush.xpose.msra.mxu0 0.0
    %1865 = vmatpush.xpose.msra.mxu0 0.0
    %1866 = vmatpush.xpose.msra.mxu0 0.0
    %1867 = vmatpush.xpose.msra.mxu0 0.0
    %1868 = vmatpush.xpose.msra.mxu0 %v1385
    %1869 = vmatpush.xpose.msra.mxu0 %v1358
    %1870 = vmatmul.f32.gmra.mxu0 %v1430
    %v1871 = vpop.f32.mrf.mxu0
    %v1872 = vadd.f32 %v1852, %v1871
    %1873 = vdwg.mxu0
    %1874 = vmatpush.xpose.msra.mxu0 0.0
    %1875 = vmatpush.xpose.msra.mxu0 0.0
    %1876 = vmatpush.xpose.msra.mxu0 0.0
    %1877 = vmatpush.xpose.msra.mxu0 0.0
    %1878 = vmatpush.xpose.msra.mxu0 0.0
    %1879 = vmatpush.xpose.msra.mxu0 0.0
    %1880 = vmatpush.xpose.msra.mxu0 0.0
    %1881 = vmatpush.xpose.msra.mxu0 0.0
    %1882 = vmatpush.xpose.msra.mxu0 0.0
    %1883 = vmatpush.xpose.msra.mxu0 0.0
    %1884 = vmatpush.xpose.msra.mxu0 0.0
    %1885 = vmatpush.xpose.msra.mxu0 0.0
    %1886 = vmatpush.xpose.msra.mxu0 0.0
    %1887 = vmatpush.xpose.msra.mxu0 0.0
    %1888 = vmatpush.xpose.msra.mxu0 %v1386
    %1889 = vmatpush.xpose.msra.mxu0 %v1359
    %1890 = vmatmul.f32.gmra.mxu0 %v1431
    %v1891 = vpop.f32.mrf.mxu0
    %v1892 = vadd.f32 %v1872, %v1891
    %1893 = vdwg.mxu0
    %1894 = vmatpush.xpose.msra.mxu0 0.0
    %1895 = vmatpush.xpose.msra.mxu0 0.0
    %1896 = vmatpush.xpose.msra.mxu0 0.0
    %1897 = vmatpush.xpose.msra.mxu0 0.0
    %1898 = vmatpush.xpose.msra.mxu0 0.0
    %1899 = vmatpush.xpose.msra.mxu0 0.0
    %1900 = vmatpush.xpose.msra.mxu0 0.0
    %1901 = vmatpush.xpose.msra.mxu0 0.0
    %1902 = vmatpush.xpose.msra.mxu0 0.0
    %1903 = vmatpush.xpose.msra.mxu0 0.0
    %1904 = vmatpush.xpose.msra.mxu0 0.0
    %1905 = vmatpush.xpose.msra.mxu0 0.0
    %1906 = vmatpush.xpose.msra.mxu0 0.0
    %1907 = vmatpush.xpose.msra.mxu0 0.0
    %1908 = vmatpush.xpose.msra.mxu0 %v1387
    %1909 = vmatpush.xpose.msra.mxu0 %v1360
    %1910 = vmatmul.f32.gmra.mxu0 %v1432
    %v1911 = vpop.f32.mrf.mxu0
    %v1912 = vadd.f32 %v1892, %v1911
    %1913 = vdwg.mxu0
    %1914 = vmatpush.xpose.msra.mxu0 0.0
    %1915 = vmatpush.xpose.msra.mxu0 0.0
    %1916 = vmatpush.xpose.msra.mxu0 0.0
    %1917 = vmatpush.xpose.msra.mxu0 0.0
    %1918 = vmatpush.xpose.msra.mxu0 0.0
    %1919 = vmatpush.xpose.msra.mxu0 0.0
    %1920 = vmatpush.xpose.msra.mxu0 0.0
    %1921 = vmatpush.xpose.msra.mxu0 0.0
    %1922 = vmatpush.xpose.msra.mxu0 0.0
    %1923 = vmatpush.xpose.msra.mxu0 0.0
    %1924 = vmatpush.xpose.msra.mxu0 0.0
    %1925 = vmatpush.xpose.msra.mxu0 0.0
    %1926 = vmatpush.xpose.msra.mxu0 0.0
    %1927 = vmatpush.xpose.msra.mxu0 0.0
    %1928 = vmatpush.xpose.msra.mxu0 %v1388
    %1929 = vmatpush.xpose.msra.mxu0 %v1361
    %1930 = vmatmul.f32.gmra.mxu0 %v1433
    %v1931 = vpop.f32.mrf.mxu0
    %v1932 = vadd.f32 %v1912, %v1931
    %1933 = vdwg.mxu0
    %1934 = vmatpush.xpose.msra.mxu0 0.0
    %1935 = vmatpush.xpose.msra.mxu0 0.0
    %1936 = vmatpush.xpose.msra.mxu0 0.0
    %1937 = vmatpush.xpose.msra.mxu0 0.0
    %1938 = vmatpush.xpose.msra.mxu0 0.0
    %1939 = vmatpush.xpose.msra.mxu0 0.0
    %1940 = vmatpush.xpose.msra.mxu0 0.0
    %1941 = vmatpush.xpose.msra.mxu0 0.0
    %1942 = vmatpush.xpose.msra.mxu0 0.0
    %1943 = vmatpush.xpose.msra.mxu0 0.0
    %1944 = vmatpush.xpose.msra.mxu0 0.0
    %1945 = vmatpush.xpose.msra.mxu0 0.0
    %1946 = vmatpush.xpose.msra.mxu0 0.0
    %1947 = vmatpush.xpose.msra.mxu0 0.0
    %1948 = vmatpush.xpose.msra.mxu0 %v1389
    %1949 = vmatpush.xpose.msra.mxu0 %v1362
    %1950 = vmatmul.f32.gmra.mxu0 %v1434
    %v1951 = vpop.f32.mrf.mxu0
    %v1952 = vadd.f32 %v1932, %v1951
    %1953 = vdwg.mxu0
    %1954 = vmatpush.xpose.msra.mxu0 0.0
    %1955 = vmatpush.xpose.msra.mxu0 0.0
    %1956 = vmatpush.xpose.msra.mxu0 0.0
    %1957 = vmatpush.xpose.msra.mxu0 0.0
    %1958 = vmatpush.xpose.msra.mxu0 0.0
    %1959 = vmatpush.xpose.msra.mxu0 0.0
    %1960 = vmatpush.xpose.msra.mxu0 0.0
    %1961 = vmatpush.xpose.msra.mxu0 0.0
    %1962 = vmatpush.xpose.msra.mxu0 0.0
    %1963 = vmatpush.xpose.msra.mxu0 0.0
    %1964 = vmatpush.xpose.msra.mxu0 0.0
    %1965 = vmatpush.xpose.msra.mxu0 0.0
    %1966 = vmatpush.xpose.msra.mxu0 0.0
    %1967 = vmatpush.xpose.msra.mxu0 0.0
    %1968 = vmatpush.xpose.msra.mxu0 %v1390
    %1969 = vmatpush.xpose.msra.mxu0 %v1363
    %1970 = vmatmul.f32.gmra.mxu0 %v1436
    %v1971 = vpop.f32.mrf.mxu0
    %v1972 = vadd.f32 %v1952, %v1971
    %1973 = vdwg.mxu0
    %1974 = vmatpush.xpose.msra.mxu0 0.0
    %1975 = vmatpush.xpose.msra.mxu0 0.0
    %1976 = vmatpush.xpose.msra.mxu0 0.0
    %1977 = vmatpush.xpose.msra.mxu0 0.0
    %1978 = vmatpush.xpose.msra.mxu0 0.0
    %1979 = vmatpush.xpose.msra.mxu0 0.0
    %1980 = vmatpush.xpose.msra.mxu0 0.0
    %1981 = vmatpush.xpose.msra.mxu0 0.0
    %1982 = vmatpush.xpose.msra.mxu0 0.0
    %1983 = vmatpush.xpose.msra.mxu0 0.0
    %1984 = vmatpush.xpose.msra.mxu0 0.0
    %1985 = vmatpush.xpose.msra.mxu0 0.0
    %1986 = vmatpush.xpose.msra.mxu0 0.0
    %1987 = vmatpush.xpose.msra.mxu0 0.0
    %1988 = vmatpush.xpose.msra.mxu0 %v1391
    %1989 = vmatpush.xpose.msra.mxu0 %v1364
    %1990 = vmatmul.f32.gmra.mxu0 %v1437
    %v1991 = vpop.f32.mrf.mxu0
    %v1992 = vadd.f32 %v1972, %v1991
    %1993 = vdwg.mxu0
    %1994 = vmatpush.xpose.msra.mxu0 0.0
    %1995 = vmatpush.xpose.msra.mxu0 0.0
    %1996 = vmatpush.xpose.msra.mxu0 0.0
    %1997 = vmatpush.xpose.msra.mxu0 0.0
    %1998 = vmatpush.xpose.msra.mxu0 0.0
    %1999 = vmatpush.xpose.msra.mxu0 0.0
    %2000 = vmatpush.xpose.msra.mxu0 0.0
    %2001 = vmatpush.xpose.msra.mxu0 0.0
    %2002 = vmatpush.xpose.msra.mxu0 0.0
    %2003 = vmatpush.xpose.msra.mxu0 0.0
    %2004 = vmatpush.xpose.msra.mxu0 0.0
    %2005 = vmatpush.xpose.msra.mxu0 0.0
    %2006 = vmatpush.xpose.msra.mxu0 0.0
    %2007 = vmatpush.xpose.msra.mxu0 0.0
    %2008 = vmatpush.xpose.msra.mxu0 %v1472
    %2009 = vmatpush.xpose.msra.mxu0 %v1469
    %2010 = vmatmul.f32.gmra.mxu0 %v1466
    %v2011 = vpop.f32.mrf.mxu0
    %v2012 = vadd.f32 %v1992, %v2011
    %2013 = vdwg.mxu0
    %vm2014 = vcmask 74752
    %2015 = vst.msk [vmem:[#allocation3] sm:$0x3] %vm2014, %v2012
    // Predicated region
    $region30: #{cnn_forward.1} parent=1 // pred_check
      _
    $region31: #{cnn_forward.1} parent=1 // pred_check_branch
      %2017 = sbr.rel (0) target = $region33
    $region32: #{cnn_forward.1} parent=1 // pred_region
      %2019 = vsyncadd [#allocation4], 0
      %s2021 = sshll.u32 [#allocation3], 4
      %s2022 = int_to_ptr.vmem [resolvable:$true] %s2021
      %s2023 = sshll.u32 %s7, 4
      %s2024 = int_to_ptr.hbm [resolvable:$true] %s2023
      %2026 = dma.vmem_to_hbm [thread:$0]  %s2022, 32, %s2024, [#allocation4]
    $region33: #{cnn_forward.1} parent=1 // pred_fallthru
      _
    // Predicated region
    $region34: #{cnn_forward.1} parent=1 // pred_check
      _
    $region35: #{cnn_forward.1} parent=1 // pred_check_branch
      %2028 = sbr.rel (0) target = $region37
    $region36: #{cnn_forward.1} parent=1 // pred_region
      %2030 = dma.done [#allocation4], 32
    $region37: #{cnn_forward.1} parent=1 // pred_fallthru
      _
    %2031 = vsyncpa [#allocation4], 1

</llo_original>
